<compile_context>
chip_gen: v5e
topology: v5e:2x2
jax: 0.10.0
libtpu: 0.0.40
codegen_flags: <defaults>
</compile_context>

<pallas_src>
import jax
import jax.numpy as jnp
from jax.experimental import pallas as pl
from jax.experimental.pallas import tpu as pltpu


def _round_up(n, m):
    return ((n + m - 1) // m) * m


def _mlp_kernel(x_ref, w1_ref, b1_ref, w2_ref, b2_ref, w3_ref, b3_ref, o_ref):
    # x is already bf16 (cast fused into the wrapper's pad / pre-pass).
    x = x_ref[...]

    # fc1 + ReLU  (bf16 MXU operands, f32 accumulate / elementwise)
    h1 = jnp.dot(x, w1_ref[...], preferred_element_type=jnp.float32)
    h1 = jnp.maximum(h1 + b1_ref[...], 0.0)

    # fc2 + ReLU
    h2 = jnp.dot(h1.astype(jnp.bfloat16), w2_ref[...],
                 preferred_element_type=jnp.float32)
    h2 = jnp.maximum(h2 + b2_ref[...], 0.0)

    # fc3 + Sigmoid (exact: f32 exp on the EUP + exact divide; epilogue is
    # off the critical path at these sizes).
    h3 = jnp.dot(h2.astype(jnp.bfloat16), w3_ref[...],
                 preferred_element_type=jnp.float32)
    h3 = h3 + b3_ref[...]
    out = 1.0 / (1.0 + jnp.exp(-h3))

    o_ref[...] = out.astype(o_ref.dtype)


def init_params(key, input_size, hidden_size, output_size):
    """Deterministic init matching nn.Linear shapes (weights stored transposed:
    [in_features, out_features], biases [1, out_features]). All float32."""
    h2 = hidden_size // 2
    keys = jax.random.split(key, 6)

    def linear(kw, kb, fan_in, fan_out):
        bound = 1.0 / jnp.sqrt(fan_in)
        w = jax.random.uniform(kw, (fan_in, fan_out), jnp.float32, -bound, bound)
        b = jax.random.uniform(kb, (1, fan_out), jnp.float32, -bound, bound)
        return w, b

    w1, b1 = linear(keys[0], keys[1], input_size, hidden_size)
    w2, b2 = linear(keys[2], keys[3], hidden_size, h2)
    w3, b3 = linear(keys[4], keys[5], h2, output_size)
    return {"w1": w1, "b1": b1, "w2": w2, "b2": b2, "w3": w3, "b3": b3}


def prep_params(params):
    """Zero-pad only the LANE (output-feature) dims up to multiples of 128 --
    done once, not per call -- and cast weights to bf16 for the MXU / halved
    weight DMA.  The input-feature (K) dim of fc1 is NOT padded."""
    def pad2(a, rows, cols):
        pr, pc = rows - a.shape[0], cols - a.shape[1]
        if pr or pc:
            a = jnp.pad(a, ((0, pr), (0, pc)))
        return a

    in_size, hid = params["w1"].shape
    h2 = params["w2"].shape[1]
    out_size = params["w3"].shape[1]

    hid_p = _round_up(hid, 128)
    h2_p = _round_up(h2, 128)
    out_p = _round_up(out_size, 128)

    return {
        "w1": pad2(params["w1"], in_size, hid_p).astype(jnp.bfloat16),  # no K pad
        "b1": pad2(params["b1"], 1, hid_p),                             # f32
        "w2": pad2(params["w2"], hid_p, h2_p).astype(jnp.bfloat16),
        "b2": pad2(params["b2"], 1, h2_p),                              # f32
        "w3": pad2(params["w3"], h2_p, out_p).astype(jnp.bfloat16),
        "b3": pad2(params["b3"], 1, out_p),                             # f32
        "in_size": in_size,
        "out_size": out_size,
    }


def classifier_forward(x, padded, *, tile_b=None, out_dtype=jnp.bfloat16,
                       trim=True):
    """x: [B, input_size] float32.  padded: output of prep_params.

    Returns [B, output_size] (out_dtype) if trim=True, else the padded
    lane-dense [b_pad, out_pad] slab (consumer must ignore cols >= output_size).
    """
    w1, b1 = padded["w1"], padded["b1"]
    w2, b2 = padded["w2"], padded["b2"]
    w3, b3 = padded["w3"], padded["b3"]
    in_size, out_size = padded["in_size"], padded["out_size"]
    hid_p, h2_p, out_pad = w1.shape[1], w2.shape[1], w3.shape[1]

    B = x.shape[0]
    assert x.shape[1] == in_size

    # Batch tile selection: few large steps (per-step overhead ~0.35us vs tiny
    # per-step compute).  Single step for small batches; 512-row steps (a
    # 256-multiple, filling the v6e/v7x 256-wide MXU) for large ones.
    # TODO(synk): on v7x, callers with small B may prefer tile_b = b_pad // 2
    # so the "parallel" batch axis feeds both TensorCores.
    if tile_b is None:
        tile_b = 512 if B > 512 else _round_up(max(B, 16), 16)
    tile_b = _round_up(tile_b, 16)
    b_pad = _round_up(B, tile_b)

    # Fused pad + bf16 cast of the activation (cast rides on the pad copy);
    # when the batch is already tile-aligned, the cast is the only pre-pass
    # and there is no jnp.pad HBM round trip at all.
    if b_pad != B:
        x_p = jnp.pad(x, ((0, b_pad - B), (0, 0))).astype(jnp.bfloat16)
    else:
        x_p = x.astype(jnp.bfloat16)

    grid = (b_pad // tile_b,)

    # Explicit VMEM budget: resident weights/biases + double-buffered IO tiles
    # + f32 intermediates, with generous headroom, clamped to fit v7x (64 MiB).
    weight_bytes = sum(int(a.size) * a.dtype.itemsize
                       for a in (w1, b1, w2, b2, w3, b3))
    io_bytes = 2 * tile_b * (in_size * 2 + out_pad * jnp.dtype(out_dtype).itemsize)
    act_bytes = tile_b * (hid_p + h2_p) * 4
    est = 2 * weight_bytes + io_bytes + act_bytes
    vmem_limit = int(min(max(2 * est + (8 << 20), 32 << 20), 64 << 20))

    def build(weight_pipeline_mode):
        def resident(a):
            # Constant block index every grid step -> stays VMEM-resident.
            return pl.BlockSpec(a.shape, lambda i: (0,) * a.ndim,
                                pipeline_mode=weight_pipeline_mode)

        return pl.pallas_call(
            _mlp_kernel,
            out_shape=jax.ShapeDtypeStruct((b_pad, out_pad), out_dtype),
            grid=grid,
            in_specs=[
                # Last dim == full array dim, so no 128-padding of K needed.
                pl.BlockSpec((tile_b, in_size), lambda i: (i, 0)),
                resident(w1), resident(b1),
                resident(w2), resident(b2),
                resident(w3), resident(b3),
            ],
            out_specs=pl.BlockSpec((tile_b, out_pad), lambda i: (i, 0)),
            compiler_params=pltpu.CompilerParams(
                dimension_semantics=("parallel",),
                vmem_limit_bytes=vmem_limit),
        )

    try:
        # Constant-index weight/bias blocks never re-DMA -> 1 buffer is enough.
        out = build(pl.Buffered(buffer_count=1))(x_p, w1, b1, w2, b2, w3, b3)
    except Exception:
        # Fallback: default double-buffered specs if this JAX version rejects
        # single-buffered pipeline_mode.
        out = build(None)(x_p, w1, b1, w2, b2, w3, b3)

    if trim:
        out = out[:B, :out_size]
    return out


def reference_forward(x, p):
    """Pure f32 JAX reference (matches the PyTorch module)."""
    h1 = jnp.maximum(x @ p["w1"] + p["b1"], 0.0)
    h2 = jnp.maximum(h1 @ p["w2"] + p["b2"], 0.0)
    return jax.nn.sigmoid(h2 @ p["w3"] + p["b3"])


if __name__ == "__main__":
    input_size, hidden_size, output_size = 32, 32, 4
    batch = 256          # tile-aligned -> no pre-pad, single grid step

    key = jax.random.PRNGKey(0)
    kx, kp = jax.random.split(key)
    x = jax.random.normal(kx, (batch, input_size), jnp.float32)

    params = init_params(kp, input_size, hidden_size, output_size)
    padded = prep_params(params)

    out = classifier_forward(x, padded)
    out = jax.block_until_ready(out)

    ref = reference_forward(x, params)
    assert out.shape == (batch, output_size)
    max_err = float(jnp.max(jnp.abs(out.astype(jnp.float32) - ref)))
    # bf16 matmul operands + bf16 output -> relaxed tolerance.
    assert max_err < 2e-2, f"mismatch vs JAX reference: max abs err {max_err}"

    print("KERNEL_OK")
</pallas_src>

<mosaic_0001>
module attributes {stable_mosaic.version = 11 : i64} {
  func.func @_mlp_kernel(%arg0: i32, %arg1: memref<256x32xbf16, #tpu.memory_space<vmem>>, %arg2: memref<32x128xbf16, #tpu.memory_space<vmem>>, %arg3: memref<1x128xf32, #tpu.memory_space<vmem>>, %arg4: memref<128x128xbf16, #tpu.memory_space<vmem>>, %arg5: memref<1x128xf32, #tpu.memory_space<vmem>>, %arg6: memref<128x128xbf16, #tpu.memory_space<vmem>>, %arg7: memref<1x128xf32, #tpu.memory_space<vmem>>, %arg8: memref<256x128xbf16, #tpu.memory_space<vmem>>) attributes {dimension_semantics = [#tpu.dimension_semantics<parallel>], iteration_bounds = array<i64: 1>, scalar_prefetch = 0 : i64, scratch_operands = 0 : i64, tpu.core_type = #tpu.core_type<tc>, window_params = [{transform_indices = @transform_0, window_bounds = array<i64: 256, 32>}, {pipeline_mode = #tpu.pipeline_mode<synchronous>, transform_indices = @transform_1, window_bounds = array<i64: 32, 128>}, {pipeline_mode = #tpu.pipeline_mode<synchronous>, transform_indices = @transform_2, window_bounds = array<i64: 1, 128>}, {pipeline_mode = #tpu.pipeline_mode<synchronous>, transform_indices = @transform_3, window_bounds = array<i64: 128, 128>}, {pipeline_mode = #tpu.pipeline_mode<synchronous>, transform_indices = @transform_4, window_bounds = array<i64: 1, 128>}, {pipeline_mode = #tpu.pipeline_mode<synchronous>, transform_indices = @transform_5, window_bounds = array<i64: 128, 128>}, {pipeline_mode = #tpu.pipeline_mode<synchronous>, transform_indices = @transform_6, window_bounds = array<i64: 1, 128>}, {transform_indices = @transform_7, window_bounds = array<i64: 256, 128>}]} {
    %c0 = arith.constant 0 : index
    %c0_0 = arith.constant 0 : index
    %0 = vector.load %arg1[%c0, %c0_0] : memref<256x32xbf16, #tpu.memory_space<vmem>>, vector<256x32xbf16>
    %c0_1 = arith.constant 0 : index
    %c0_2 = arith.constant 0 : index
    %1 = vector.load %arg2[%c0_1, %c0_2] : memref<32x128xbf16, #tpu.memory_space<vmem>>, vector<32x128xbf16>
    %cst = arith.constant dense<0.000000e+00> : vector<256x128xf32>
    %2 = tpu.matmul %0, %1, %cst {dimension_numbers = #tpu.dot_dimension_numbers<[1], [0], [0], [1], [0, 0, 1, 1], [], []>} : vector<256x32xbf16>, vector<32x128xbf16>, vector<256x128xf32> -> vector<256x128xf32>
    %c0_3 = arith.constant 0 : index
    %c0_4 = arith.constant 0 : index
    %3 = vector.load %arg3[%c0_3, %c0_4] : memref<1x128xf32, #tpu.memory_space<vmem>>, vector<1x128xf32>
    %4 = vector.broadcast %3 : vector<1x128xf32> to vector<256x128xf32>
    %5 = arith.addf %2, %4 : vector<256x128xf32>
    %cst_5 = arith.constant 0.000000e+00 : f32
    %6 = vector.broadcast %cst_5 : f32 to vector<256x128xf32>
    %7 = arith.maximumf %5, %6 : vector<256x128xf32>
    %8 = arith.truncf %7 : vector<256x128xf32> to vector<256x128xbf16>
    %c0_6 = arith.constant 0 : index
    %c0_7 = arith.constant 0 : index
    %9 = vector.load %arg4[%c0_6, %c0_7] : memref<128x128xbf16, #tpu.memory_space<vmem>>, vector<128x128xbf16>
    %cst_8 = arith.constant dense<0.000000e+00> : vector<256x128xf32>
    %10 = tpu.matmul %8, %9, %cst_8 {dimension_numbers = #tpu.dot_dimension_numbers<[1], [0], [0], [1], [0, 0, 1, 1], [], []>} : vector<256x128xbf16>, vector<128x128xbf16>, vector<256x128xf32> -> vector<256x128xf32>
    %c0_9 = arith.constant 0 : index
    %c0_10 = arith.constant 0 : index
    %11 = vector.load %arg5[%c0_9, %c0_10] : memref<1x128xf32, #tpu.memory_space<vmem>>, vector<1x128xf32>
    %12 = vector.broadcast %11 : vector<1x128xf32> to vector<256x128xf32>
    %13 = arith.addf %10, %12 : vector<256x128xf32>
    %cst_11 = arith.constant 0.000000e+00 : f32
    %14 = vector.broadcast %cst_11 : f32 to vector<256x128xf32>
    %15 = arith.maximumf %13, %14 : vector<256x128xf32>
    %16 = arith.truncf %15 : vector<256x128xf32> to vector<256x128xbf16>
    %c0_12 = arith.constant 0 : index
    %c0_13 = arith.constant 0 : index
    %17 = vector.load %arg6[%c0_12, %c0_13] : memref<128x128xbf16, #tpu.memory_space<vmem>>, vector<128x128xbf16>
    %cst_14 = arith.constant dense<0.000000e+00> : vector<256x128xf32>
    %18 = tpu.matmul %16, %17, %cst_14 {dimension_numbers = #tpu.dot_dimension_numbers<[1], [0], [0], [1], [0, 0, 1, 1], [], []>} : vector<256x128xbf16>, vector<128x128xbf16>, vector<256x128xf32> -> vector<256x128xf32>
    %c0_15 = arith.constant 0 : index
    %c0_16 = arith.constant 0 : index
    %19 = vector.load %arg7[%c0_15, %c0_16] : memref<1x128xf32, #tpu.memory_space<vmem>>, vector<1x128xf32>
    %20 = vector.broadcast %19 : vector<1x128xf32> to vector<256x128xf32>
    %21 = arith.addf %18, %20 : vector<256x128xf32>
    %cst_17 = arith.constant 0.000000e+00 : f32
    %22 = vector.broadcast %cst_17 : f32 to vector<256x128xf32>
    %23 = arith.subf %22, %21 : vector<256x128xf32>
    %24 = math.exp %23 : vector<256x128xf32>
    %cst_18 = arith.constant 1.000000e+00 : f32
    %25 = vector.broadcast %cst_18 : f32 to vector<256x128xf32>
    %26 = arith.addf %25, %24 : vector<256x128xf32>
    %cst_19 = arith.constant 1.000000e+00 : f32
    %27 = vector.broadcast %cst_19 : f32 to vector<256x128xf32>
    %28 = arith.divf %27, %26 : vector<256x128xf32>
    %29 = arith.truncf %28 : vector<256x128xf32> to vector<256x128xbf16>
    %c0_20 = arith.constant 0 : index
    %c0_21 = arith.constant 0 : index
    %30 = vector.load %arg8[%c0_20, %c0_21] : memref<256x128xbf16, #tpu.memory_space<vmem>>, vector<256x128xbf16>
    tpu.vector_store %arg8[%c0_20, %c0_21], %29 {strides = array<i32>} : memref<256x128xbf16, #tpu.memory_space<vmem>>, vector<256x128xbf16>,
    return
  }
  func.func @transform_0(%arg0: i32) -> (i32, i32) {
    %c0_i32 = arith.constant 0 : i32
    %c0_i32_0 = arith.constant 0 : i32
    return %arg0, %c0_i32 : i32, i32
  }
  func.func @transform_1(%arg0: i32) -> (i32, i32) {
    %c0_i32 = arith.constant 0 : i32
    %c0_i32_0 = arith.constant 0 : i32
    %c0_i32_1 = arith.constant 0 : i32
    return %c0_i32, %c0_i32_0 : i32, i32
  }
  func.func @transform_2(%arg0: i32) -> (i32, i32) {
    %c0_i32 = arith.constant 0 : i32
    %c0_i32_0 = arith.constant 0 : i32
    %c0_i32_1 = arith.constant 0 : i32
    return %c0_i32, %c0_i32_0 : i32, i32
  }
  func.func @transform_3(%arg0: i32) -> (i32, i32) {
    %c0_i32 = arith.constant 0 : i32
    %c0_i32_0 = arith.constant 0 : i32
    %c0_i32_1 = arith.constant 0 : i32
    return %c0_i32, %c0_i32_0 : i32, i32
  }
  func.func @transform_4(%arg0: i32) -> (i32, i32) {
    %c0_i32 = arith.constant 0 : i32
    %c0_i32_0 = arith.constant 0 : i32
    %c0_i32_1 = arith.constant 0 : i32
    return %c0_i32, %c0_i32_0 : i32, i32
  }
  func.func @transform_5(%arg0: i32) -> (i32, i32) {
    %c0_i32 = arith.constant 0 : i32
    %c0_i32_0 = arith.constant 0 : i32
    %c0_i32_1 = arith.constant 0 : i32
    return %c0_i32, %c0_i32_0 : i32, i32
  }
  func.func @transform_6(%arg0: i32) -> (i32, i32) {
    %c0_i32 = arith.constant 0 : i32
    %c0_i32_0 = arith.constant 0 : i32
    %c0_i32_1 = arith.constant 0 : i32
    return %c0_i32, %c0_i32_0 : i32, i32
  }
  func.func @transform_7(%arg0: i32) -> (i32, i32) {
    %c0_i32 = arith.constant 0 : i32
    %c0_i32_0 = arith.constant 0 : i32
    return %arg0, %c0_i32 : i32, i32
  }
}

module attributes {stable_mosaic.version = 11 : i64} {
  func.func @_mlp_kernel(%arg0: i32, %arg1: memref<256x32xbf16, #tpu.memory_space<vmem>>, %arg2: memref<32x128xbf16, #tpu.memory_space<vmem>>, %arg3: memref<1x128xf32, #tpu.memory_space<vmem>>, %arg4: memref<128x128xbf16, #tpu.memory_space<vmem>>, %arg5: memref<1x128xf32, #tpu.memory_space<vmem>>, %arg6: memref<128x128xbf16, #tpu.memory_space<vmem>>, %arg7: memref<1x128xf32, #tpu.memory_space<vmem>>, %arg8: memref<256x128xbf16, #tpu.memory_space<vmem>>) attributes {dimension_semantics = [#tpu.dimension_semantics<parallel>], iteration_bounds = array<i64: 1>, scalar_prefetch = 0 : i64, scratch_operands = 0 : i64, tpu.core_type = #tpu.core_type<tc>, window_params = [{transform_indices = @transform_0, window_bounds = array<i64: 256, 32>}, {pipeline_mode = #tpu.pipeline_mode<synchronous>, transform_indices = @transform_1, window_bounds = array<i64: 32, 128>}, {pipeline_mode = #tpu.pipeline_mode<synchronous>, transform_indices = @transform_2, window_bounds = array<i64: 1, 128>}, {pipeline_mode = #tpu.pipeline_mode<synchronous>, transform_indices = @transform_3, window_bounds = array<i64: 128, 128>}, {pipeline_mode = #tpu.pipeline_mode<synchronous>, transform_indices = @transform_4, window_bounds = array<i64: 1, 128>}, {pipeline_mode = #tpu.pipeline_mode<synchronous>, transform_indices = @transform_5, window_bounds = array<i64: 128, 128>}, {pipeline_mode = #tpu.pipeline_mode<synchronous>, transform_indices = @transform_6, window_bounds = array<i64: 1, 128>}, {transform_indices = @transform_7, window_bounds = array<i64: 256, 128>}]} {
    %c0 = arith.constant 0 : index
    %c0_0 = arith.constant 0 : index
    %0 = vector.load %arg1[%c0, %c0_0] : memref<256x32xbf16, #tpu.memory_space<vmem>>, vector<256x32xbf16>
    %c0_1 = arith.constant 0 : index
    %c0_2 = arith.constant 0 : index
    %1 = vector.load %arg2[%c0_1, %c0_2] : memref<32x128xbf16, #tpu.memory_space<vmem>>, vector<32x128xbf16>
    %cst = arith.constant dense<0.000000e+00> : vector<256x128xf32>
    %2 = tpu.matmul %0, %1, %cst {dimension_numbers = #tpu.dot_dimension_numbers<[1], [0], [0], [1], [0, 0, 1, 1], [], []>} : vector<256x32xbf16>, vector<32x128xbf16>, vector<256x128xf32> -> vector<256x128xf32>
    %c0_3 = arith.constant 0 : index
    %c0_4 = arith.constant 0 : index
    %3 = vector.load %arg3[%c0_3, %c0_4] : memref<1x128xf32, #tpu.memory_space<vmem>>, vector<1x128xf32>
    %4 = vector.broadcast %3 : vector<1x128xf32> to vector<256x128xf32>
    %5 = arith.addf %2, %4 : vector<256x128xf32>
    %cst_5 = arith.constant 0.000000e+00 : f32
    %6 = vector.broadcast %cst_5 : f32 to vector<256x128xf32>
    %7 = arith.maximumf %5, %6 : vector<256x128xf32>
    %8 = arith.truncf %7 : vector<256x128xf32> to vector<256x128xbf16>
    %c0_6 = arith.constant 0 : index
    %c0_7 = arith.constant 0 : index
    %9 = vector.load %arg4[%c0_6, %c0_7] : memref<128x128xbf16, #tpu.memory_space<vmem>>, vector<128x128xbf16>
    %cst_8 = arith.constant dense<0.000000e+00> : vector<256x128xf32>
    %10 = tpu.matmul %8, %9, %cst_8 {dimension_numbers = #tpu.dot_dimension_numbers<[1], [0], [0], [1], [0, 0, 1, 1], [], []>} : vector<256x128xbf16>, vector<128x128xbf16>, vector<256x128xf32> -> vector<256x128xf32>
    %c0_9 = arith.constant 0 : index
    %c0_10 = arith.constant 0 : index
    %11 = vector.load %arg5[%c0_9, %c0_10] : memref<1x128xf32, #tpu.memory_space<vmem>>, vector<1x128xf32>
    %12 = vector.broadcast %11 : vector<1x128xf32> to vector<256x128xf32>
    %13 = arith.addf %10, %12 : vector<256x128xf32>
    %cst_11 = arith.constant 0.000000e+00 : f32
    %14 = vector.broadcast %cst_11 : f32 to vector<256x128xf32>
    %15 = arith.maximumf %13, %14 : vector<256x128xf32>
    %16 = arith.truncf %15 : vector<256x128xf32> to vector<256x128xbf16>
    %c0_12 = arith.constant 0 : index
    %c0_13 = arith.constant 0 : index
    %17 = vector.load %arg6[%c0_12, %c0_13] : memref<128x128xbf16, #tpu.memory_space<vmem>>, vector<128x128xbf16>
    %cst_14 = arith.constant dense<0.000000e+00> : vector<256x128xf32>
    %18 = tpu.matmul %16, %17, %cst_14 {dimension_numbers = #tpu.dot_dimension_numbers<[1], [0], [0], [1], [0, 0, 1, 1], [], []>} : vector<256x128xbf16>, vector<128x128xbf16>, vector<256x128xf32> -> vector<256x128xf32>
    %c0_15 = arith.constant 0 : index
    %c0_16 = arith.constant 0 : index
    %19 = vector.load %arg7[%c0_15, %c0_16] : memref<1x128xf32, #tpu.memory_space<vmem>>, vector<1x128xf32>
    %20 = vector.broadcast %19 : vector<1x128xf32> to vector<256x128xf32>
    %21 = arith.addf %18, %20 : vector<256x128xf32>
    %cst_17 = arith.constant 0.000000e+00 : f32
    %22 = vector.broadcast %cst_17 : f32 to vector<256x128xf32>
    %23 = arith.subf %22, %21 : vector<256x128xf32>
    %24 = math.exp %23 : vector<256x128xf32>
    %cst_18 = arith.constant 1.000000e+00 : f32
    %25 = vector.broadcast %cst_18 : f32 to vector<256x128xf32>
    %26 = arith.addf %25, %24 : vector<256x128xf32>
    %cst_19 = arith.constant 1.000000e+00 : f32
    %27 = vector.broadcast %cst_19 : f32 to vector<256x128xf32>
    %28 = arith.divf %27, %26 : vector<256x128xf32>
    %29 = arith.truncf %28 : vector<256x128xf32> to vector<256x128xbf16>
    %c0_20 = arith.constant 0 : index
    %c0_21 = arith.constant 0 : index
    %30 = vector.load %arg8[%c0_20, %c0_21] : memref<256x128xbf16, #tpu.memory_space<vmem>>, vector<256x128xbf16>
    tpu.vector_store %arg8[%c0_20, %c0_21], %29 {strides = array<i32>} : memref<256x128xbf16, #tpu.memory_space<vmem>>, vector<256x128xbf16>,
    return
  }
  func.func @transform_0(%arg0: i32) -> (i32, i32) {
    %c0_i32 = arith.constant 0 : i32
    %c0_i32_0 = arith.constant 0 : i32
    return %arg0, %c0_i32 : i32, i32
  }
  func.func @transform_1(%arg0: i32) -> (i32, i32) {
    %c0_i32 = arith.constant 0 : i32
    %c0_i32_0 = arith.constant 0 : i32
    %c0_i32_1 = arith.constant 0 : i32
    return %c0_i32, %c0_i32_0 : i32, i32
  }
  func.func @transform_2(%arg0: i32) -> (i32, i32) {
    %c0_i32 = arith.constant 0 : i32
    %c0_i32_0 = arith.constant 0 : i32
    %c0_i32_1 = arith.constant 0 : i32
    return %c0_i32, %c0_i32_0 : i32, i32
  }
  func.func @transform_3(%arg0: i32) -> (i32, i32) {
    %c0_i32 = arith.constant 0 : i32
    %c0_i32_0 = arith.constant 0 : i32
    %c0_i32_1 = arith.constant 0 : i32
    return %c0_i32, %c0_i32_0 : i32, i32
  }
  func.func @transform_4(%arg0: i32) -> (i32, i32) {
    %c0_i32 = arith.constant 0 : i32
    %c0_i32_0 = arith.constant 0 : i32
    %c0_i32_1 = arith.constant 0 : i32
    return %c0_i32, %c0_i32_0 : i32, i32
  }
  func.func @transform_5(%arg0: i32) -> (i32, i32) {
    %c0_i32 = arith.constant 0 : i32
    %c0_i32_0 = arith.constant 0 : i32
    %c0_i32_1 = arith.constant 0 : i32
    return %c0_i32, %c0_i32_0 : i32, i32
  }
  func.func @transform_6(%arg0: i32) -> (i32, i32) {
    %c0_i32 = arith.constant 0 : i32
    %c0_i32_0 = arith.constant 0 : i32
    %c0_i32_1 = arith.constant 0 : i32
    return %c0_i32, %c0_i32_0 : i32, i32
  }
  func.func @transform_7(%arg0: i32) -> (i32, i32) {
    %c0_i32 = arith.constant 0 : i32
    %c0_i32_0 = arith.constant 0 : i32
    return %arg0, %c0_i32 : i32, i32
  }
}

</mosaic_0001>

<llo_original>
// kernel: tpu_custom_call.1
$region0: #{tpu_custom_call.1}
  #allocation0 [shape = 'u32[]', space=smem, size = 0x4, offset = 0x4, fixed_abs, tag = 'smem constant byte address 0x4 - core index']
  #allocation1 [shape = 'u32[72,128]{1,0:T(1,128)}', space=vmem, size = 0x9000, scoped, tag = 'internal scratch']
  %s0 = inlined_call_operand.vmem [shape: bf16[256,32], index: 0, kind: input, shape index: {}]
  %s1 = inlined_call_operand.vmem [shape: bf16[32,128], index: 1, kind: input, shape index: {}]
  %s2 = inlined_call_operand.vmem [shape: f32[1,128], index: 2, kind: input, shape index: {}]
  %s3 = inlined_call_operand.vmem [shape: bf16[128,128], index: 3, kind: input, shape index: {}]
  %s4 = inlined_call_operand.vmem [shape: f32[1,128], index: 4, kind: input, shape index: {}]
  %s5 = inlined_call_operand.vmem [shape: bf16[128,128], index: 5, kind: input, shape index: {}]
  %s6 = inlined_call_operand.vmem [shape: f32[1,128], index: 6, kind: input, shape index: {}]
  %s7 = inlined_call_operand.hbm [shape: bf16[256,128], index: 7, kind: output, shape index: {}]
  %s8 = sld [smem:[#allocation0]]
  $region38: #{tpu_custom_call.1} parent=0
    _
  %s10 = ssub.s32 1, %s8
  %s11 = scalar_select 0, %s10, %s8
  $region1: #{tpu_custom_call.1} parent=0
    #allocation2 [shape = 'u8[65536]{0}', space=vmem, size = 0x10000, scoped, tag = 'output window, operand 0, single buffered']
    #allocation3 [shape = 's32[1]{0}', space=sflag, size = 0x4, scoped, tag = 'scoped memory for tpu_custom_call.1']
    %12 = vsyncpa [#allocation3], 0
    // Predicated region
    $region2: #{tpu_custom_call.1} parent=1 // pred_check
      _
    $region3: #{tpu_custom_call.1} parent=1 // pred_check_branch
      %14 = sbr.rel (0) target = $region5
    $region4: #{tpu_custom_call.1} parent=1 // pred_region
      _
    $region5: #{tpu_custom_call.1} parent=1 // pred_fallthru
      _
    // Predicated region
    $region6: #{tpu_custom_call.1} parent=1 // pred_check
      _
    $region7: #{tpu_custom_call.1} parent=1 // pred_check_branch
      %16 = sbr.rel (0) target = $region9
    $region8: #{tpu_custom_call.1} parent=1 // pred_region
      _
    $region9: #{tpu_custom_call.1} parent=1 // pred_fallthru
      _
    // Predicated region
    $region10: #{tpu_custom_call.1} parent=1 // pred_check
      _
    $region11: #{tpu_custom_call.1} parent=1 // pred_check_branch
      %18 = sbr.rel (0) target = $region13
    $region12: #{tpu_custom_call.1} parent=1 // pred_region
      _
    $region13: #{tpu_custom_call.1} parent=1 // pred_fallthru
      _
    // Predicated region
    $region14: #{tpu_custom_call.1} parent=1 // pred_check
      _
    $region15: #{tpu_custom_call.1} parent=1 // pred_check_branch
      %20 = sbr.rel (0) target = $region17
    $region16: #{tpu_custom_call.1} parent=1 // pred_region
      _
    $region17: #{tpu_custom_call.1} parent=1 // pred_fallthru
      _
    // Predicated region
    $region18: #{tpu_custom_call.1} parent=1 // pred_check
      _
    $region19: #{tpu_custom_call.1} parent=1 // pred_check_branch
      %22 = sbr.rel (0) target = $region21
    $region20: #{tpu_custom_call.1} parent=1 // pred_region
      _
    $region21: #{tpu_custom_call.1} parent=1 // pred_fallthru
      _
    // Predicated region
    $region22: #{tpu_custom_call.1} parent=1 // pred_check
      _
    $region23: #{tpu_custom_call.1} parent=1 // pred_check_branch
      %24 = sbr.rel (0) target = $region25
    $region24: #{tpu_custom_call.1} parent=1 // pred_region
      _
    $region25: #{tpu_custom_call.1} parent=1 // pred_fallthru
      _
    // Predicated region
    $region26: #{tpu_custom_call.1} parent=1 // pred_check
      _
    $region27: #{tpu_custom_call.1} parent=1 // pred_check_branch
      %26 = sbr.rel (0) target = $region29
    $region28: #{tpu_custom_call.1} parent=1 // pred_region
      _
    $region29: #{tpu_custom_call.1} parent=1 // pred_fallthru
      _
    %v28 = vld [vmem:[%s0] sm:$0xf]
    %v29 = vld [vmem:[%s0 + $0x4] sm:$0xf]
    %v30 = vld [vmem:[%s0 + $0x8] sm:$0xf]
    %v31 = vld [vmem:[%s0 + $0xc] sm:$0xf]
    %v32 = vld [vmem:[%s0 + $0x10] sm:$0xf]
    %v33 = vld [vmem:[%s0 + $0x14] sm:$0xf]
    %v34 = vld [vmem:[%s0 + $0x18] sm:$0xf]
    %v35 = vld [vmem:[%s0 + $0x1c] sm:$0xf]
    %v36 = vld [vmem:[%s0 + $0x20] sm:$0xf]
    %v37 = vld [vmem:[%s0 + $0x24] sm:$0xf]
    %v38 = vld [vmem:[%s0 + $0x28] sm:$0xf]
    %v39 = vld [vmem:[%s0 + $0x2c] sm:$0xf]
    %v40 = vld [vmem:[%s0 + $0x30] sm:$0xf]
    %v41 = vld [vmem:[%s0 + $0x34] sm:$0xf]
    %v42 = vld [vmem:[%s0 + $0x38] sm:$0xf]
    %v43 = vld [vmem:[%s0 + $0x3c] sm:$0xf]
    %v44 = vld [vmem:[%s0 + $0x40] sm:$0xf]
    %v45 = vld [vmem:[%s0 + $0x44] sm:$0xf]
    %v46 = vld [vmem:[%s0 + $0x48] sm:$0xf]
    %v47 = vld [vmem:[%s0 + $0x4c] sm:$0xf]
    %v48 = vld [vmem:[%s0 + $0x50] sm:$0xf]
    %v49 = vld [vmem:[%s0 + $0x54] sm:$0xf]
    %v50 = vld [vmem:[%s0 + $0x58] sm:$0xf]
    %v51 = vld [vmem:[%s0 + $0x5c] sm:$0xf]
    %v52 = vld [vmem:[%s0 + $0x60] sm:$0xf]
    %v53 = vld [vmem:[%s0 + $0x64] sm:$0xf]
    %v54 = vld [vmem:[%s0 + $0x68] sm:$0xf]
    %v55 = vld [vmem:[%s0 + $0x6c] sm:$0xf]
    %v56 = vld [vmem:[%s0 + $0x70] sm:$0xf]
    %v57 = vld [vmem:[%s0 + $0x74] sm:$0xf]
    %v58 = vld [vmem:[%s0 + $0x78] sm:$0xf]
    %v59 = vld [vmem:[%s0 + $0x7c] sm:$0xf]
    %v60 = vld [vmem:[%s1] sm:$0xf]
    %v61 = vld [vmem:[%s1 + $0x4] sm:$0xf]
    %v62 = vld [vmem:[%s1 + $0x8] sm:$0xf]
    %v63 = vld [vmem:[%s1 + $0xc] sm:$0xf]
    %v64 = vld [vmem:[%s2] sm:$0x1]
    %v66 = vperm.slane %v64, 0
    %v100 = vunpack.c.l.b16 %v28
    %v101 = vunpack.c.l.b16 %v29
    %v102 = vunpack.c.l.b16 %v30
    %v103 = vunpack.c.l.b16 %v31
    %v104 = vunpack.c.l.b16 %v32
    %v105 = vunpack.c.l.b16 %v33
    %v106 = vunpack.c.l.b16 %v34
    %v107 = vunpack.c.l.b16 %v35
    %v108 = vunpack.c.l.b16 %v36
    %v109 = vunpack.c.l.b16 %v37
    %v110 = vunpack.c.l.b16 %v38
    %v111 = vunpack.c.l.b16 %v39
    %v112 = vunpack.c.l.b16 %v40
    %v113 = vunpack.c.l.b16 %v41
    %v114 = vunpack.c.l.b16 %v42
    %v115 = vunpack.c.l.b16 %v43
    %v116 = vunpack.c.l.b16 %v44
    %v117 = vunpack.c.l.b16 %v45
    %v118 = vunpack.c.l.b16 %v46
    %v119 = vunpack.c.l.b16 %v47
    %v120 = vunpack.c.l.b16 %v48
    %v121 = vunpack.c.l.b16 %v49
    %v122 = vunpack.c.l.b16 %v50
    %v123 = vunpack.c.l.b16 %v51
    %v124 = vunpack.c.l.b16 %v52
    %v125 = vunpack.c.l.b16 %v53
    %v126 = vunpack.c.l.b16 %v54
    %v127 = vunpack.c.l.b16 %v55
    %v128 = vunpack.c.l.b16 %v56
    %v129 = vunpack.c.l.b16 %v57
    %v130 = vunpack.c.l.b16 %v58
    %v131 = vunpack.c.l.b16 %v59
    %v132 = vpack.c.b16 %v101, %v100
    %v133 = vpack.c.b16 %v103, %v102
    %v134 = vpack.c.b16 %v105, %v104
    %v135 = vpack.c.b16 %v107, %v106
    %v136 = vpack.c.b16 %v109, %v108
    %v137 = vpack.c.b16 %v111, %v110
    %v138 = vpack.c.b16 %v113, %v112
    %v139 = vpack.c.b16 %v115, %v114
    %v140 = vpack.c.b16 %v117, %v116
    %v141 = vpack.c.b16 %v119, %v118
    %v142 = vpack.c.b16 %v121, %v120
    %v143 = vpack.c.b16 %v123, %v122
    %v144 = vpack.c.b16 %v125, %v124
    %v145 = vpack.c.b16 %v127, %v126
    %v146 = vpack.c.b16 %v129, %v128
    %v147 = vpack.c.b16 %v131, %v130
    %v152 = vunpack.c.l.b16 %v60
    %v153 = vunpack.c.l.b16 %v61
    %v154 = vunpack.c.l.b16 %v62
    %v155 = vunpack.c.l.b16 %v63
    %v156 = vpack.c.b16 %v153, %v152
    %v157 = vpack.c.b16 %v155, %v154
    %vm160 = vcmask 261120
    %v162 = vsel %vm160, %v132, 0
    %v165 = vsel %vm160, %v133, 0
    %v168 = vsel %vm160, %v134, 0
    %v171 = vsel %vm160, %v135, 0
    %v174 = vsel %vm160, %v136, 0
    %v177 = vsel %vm160, %v137, 0
    %v180 = vsel %vm160, %v138, 0
    %v183 = vsel %vm160, %v139, 0
    %v186 = vsel %vm160, %v140, 0
    %v189 = vsel %vm160, %v141, 0
    %v192 = vsel %vm160, %v142, 0
    %v195 = vsel %vm160, %v143, 0
    %v198 = vsel %vm160, %v144, 0
    %v201 = vsel %vm160, %v145, 0
    %v204 = vsel %vm160, %v146, 0
    %v207 = vsel %vm160, %v147, 0
    %209 = vmatpush.bf16.msra.mxu0 0
    %210 = vmatpush.bf16.msra.mxu0 0
    %211 = vmatpush.bf16.msra.mxu0 0
    %212 = vmatpush.bf16.msra.mxu0 0
    %213 = vmatpush.bf16.msra.mxu0 0
    %214 = vmatpush.bf16.msra.mxu0 0
    %215 = vmatpush.bf16.msra.mxu0 %v157
    %216 = vmatpush.bf16.msra.mxu0 %v156
    %217 = vmatmul.bf16.gmra.mxu0 %v162
    %v218 = vpop.f32.mrf.mxu0
    %v219 = vadd.f32 %v66, %v218
    %v220 = vpop.f32.mrf.mxu0
    %v221 = vadd.f32 %v66, %v220
    %222 = vmatmul.bf16.gmra.mxu0 %v165
    %v223 = vpop.f32.mrf.mxu0
    %v224 = vadd.f32 %v66, %v223
    %v225 = vpop.f32.mrf.mxu0
    %v226 = vadd.f32 %v66, %v225
    %227 = vmatmul.bf16.gmra.mxu0 %v168
    %v228 = vpop.f32.mrf.mxu0
    %v229 = vadd.f32 %v66, %v228
    %v230 = vpop.f32.mrf.mxu0
    %v231 = vadd.f32 %v66, %v230
    %232 = vmatmul.bf16.gmra.mxu0 %v171
    %v233 = vpop.f32.mrf.mxu0
    %v234 = vadd.f32 %v66, %v233
    %v235 = vpop.f32.mrf.mxu0
    %v236 = vadd.f32 %v66, %v235
    %237 = vmatmul.bf16.gmra.mxu0 %v174
    %v238 = vpop.f32.mrf.mxu0
    %v239 = vadd.f32 %v66, %v238
    %v240 = vpop.f32.mrf.mxu0
    %v241 = vadd.f32 %v66, %v240
    %242 = vmatmul.bf16.gmra.mxu0 %v177
    %v243 = vpop.f32.mrf.mxu0
    %v244 = vadd.f32 %v66, %v243
    %v245 = vpop.f32.mrf.mxu0
    %v246 = vadd.f32 %v66, %v245
    %247 = vmatmul.bf16.gmra.mxu0 %v180
    %v248 = vpop.f32.mrf.mxu0
    %v249 = vadd.f32 %v66, %v248
    %v250 = vpop.f32.mrf.mxu0
    %v251 = vadd.f32 %v66, %v250
    %252 = vmatmul.bf16.gmra.mxu0 %v183
    %v253 = vpop.f32.mrf.mxu0
    %v254 = vadd.f32 %v66, %v253
    %v255 = vpop.f32.mrf.mxu0
    %v256 = vadd.f32 %v66, %v255
    %257 = vmatmul.bf16.gmra.mxu0 %v186
    %v258 = vpop.f32.mrf.mxu0
    %v259 = vadd.f32 %v66, %v258
    %v260 = vpop.f32.mrf.mxu0
    %v261 = vadd.f32 %v66, %v260
    %262 = vmatmul.bf16.gmra.mxu0 %v189
    %v263 = vpop.f32.mrf.mxu0
    %v264 = vadd.f32 %v66, %v263
    %v265 = vpop.f32.mrf.mxu0
    %v266 = vadd.f32 %v66, %v265
    %267 = vmatmul.bf16.gmra.mxu0 %v192
    %v268 = vpop.f32.mrf.mxu0
    %v269 = vadd.f32 %v66, %v268
    %v270 = vpop.f32.mrf.mxu0
    %v271 = vadd.f32 %v66, %v270
    %272 = vmatmul.bf16.gmra.mxu0 %v195
    %v273 = vpop.f32.mrf.mxu0
    %v274 = vadd.f32 %v66, %v273
    %v275 = vpop.f32.mrf.mxu0
    %v276 = vadd.f32 %v66, %v275
    %277 = vmatmul.bf16.gmra.mxu0 %v198
    %v278 = vpop.f32.mrf.mxu0
    %v279 = vadd.f32 %v66, %v278
    %v280 = vpop.f32.mrf.mxu0
    %v281 = vadd.f32 %v66, %v280
    %282 = vmatmul.bf16.gmra.mxu0 %v201
    %v283 = vpop.f32.mrf.mxu0
    %v284 = vadd.f32 %v66, %v283
    %v285 = vpop.f32.mrf.mxu0
    %v286 = vadd.f32 %v66, %v285
    %287 = vmatmul.bf16.gmra.mxu0 %v204
    %v288 = vpop.f32.mrf.mxu0
    %v289 = vadd.f32 %v66, %v288
    %v290 = vpop.f32.mrf.mxu0
    %v291 = vadd.f32 %v66, %v290
    %292 = vmatmul.bf16.gmra.mxu0 %v207
    %v293 = vpop.f32.mrf.mxu0
    %v294 = vadd.f32 %v66, %v293
    %v295 = vpop.f32.mrf.mxu0
    %v296 = vadd.f32 %v66, %v295
    %297 = vdwg.mxu0
    %v298 = vmax.f32 %v219, 0.0
    %v299 = vmax.f32 %v221, 0.0
    %v300 = vmax.f32 %v224, 0.0
    %v301 = vmax.f32 %v226, 0.0
    %v302 = vmax.f32 %v229, 0.0
    %v303 = vmax.f32 %v231, 0.0
    %v304 = vmax.f32 %v234, 0.0
    %v305 = vmax.f32 %v236, 0.0
    %v306 = vmax.f32 %v239, 0.0
    %v307 = vmax.f32 %v241, 0.0
    %v308 = vmax.f32 %v244, 0.0
    %v309 = vmax.f32 %v246, 0.0
    %v310 = vmax.f32 %v249, 0.0
    %v311 = vmax.f32 %v251, 0.0
    %v312 = vmax.f32 %v254, 0.0
    %v313 = vmax.f32 %v256, 0.0
    %v314 = vmax.f32 %v259, 0.0
    %v315 = vmax.f32 %v261, 0.0
    %v316 = vmax.f32 %v264, 0.0
    %v317 = vmax.f32 %v266, 0.0
    %v318 = vmax.f32 %v269, 0.0
    %v319 = vmax.f32 %v271, 0.0
    %v320 = vmax.f32 %v274, 0.0
    %v321 = vmax.f32 %v276, 0.0
    %v322 = vmax.f32 %v279, 0.0
    %v323 = vmax.f32 %v281, 0.0
    %v324 = vmax.f32 %v284, 0.0
    %v325 = vmax.f32 %v286, 0.0
    %v326 = vmax.f32 %v289, 0.0
    %v327 = vmax.f32 %v291, 0.0
    %v328 = vmax.f32 %v294, 0.0
    %v329 = vmax.f32 %v296, 0.0
    %v330 = vpack.c.bf16 %v299, %v298
    %v331 = vpack.c.bf16 %v301, %v300
    %v332 = vpack.c.bf16 %v303, %v302
    %v333 = vpack.c.bf16 %v305, %v304
    %v334 = vpack.c.bf16 %v307, %v306
    %v335 = vpack.c.bf16 %v309, %v308
    %v336 = vpack.c.bf16 %v311, %v310
    %v337 = vpack.c.bf16 %v313, %v312
    %v338 = vpack.c.bf16 %v315, %v314
    %v339 = vpack.c.bf16 %v317, %v316
    %v340 = vpack.c.bf16 %v319, %v318
    %v341 = vpack.c.bf16 %v321, %v320
    %v342 = vpack.c.bf16 %v323, %v322
    %v343 = vpack.c.bf16 %v325, %v324
    %v344 = vpack.c.bf16 %v327, %v326
    %v345 = vpack.c.bf16 %v329, %v328
    %v346 = vld [vmem:[%s3] sm:$0xf]
    %v347 = vld [vmem:[%s3 + $0x4] sm:$0xf]
    %v348 = vld [vmem:[%s3 + $0x8] sm:$0xf]
    %v349 = vld [vmem:[%s3 + $0xc] sm:$0xf]
    %v350 = vld [vmem:[%s3 + $0x10] sm:$0xf]
    %v351 = vld [vmem:[%s3 + $0x14] sm:$0xf]
    %v352 = vld [vmem:[%s3 + $0x18] sm:$0xf]
    %v353 = vld [vmem:[%s3 + $0x1c] sm:$0xf]
    %v354 = vld [vmem:[%s3 + $0x20] sm:$0xf]
    %v355 = vld [vmem:[%s3 + $0x24] sm:$0xf]
    %v356 = vld [vmem:[%s3 + $0x28] sm:$0xf]
    %v357 = vld [vmem:[%s3 + $0x2c] sm:$0xf]
    %v358 = vld [vmem:[%s3 + $0x30] sm:$0xf]
    %v359 = vld [vmem:[%s3 + $0x34] sm:$0xf]
    %v360 = vld [vmem:[%s3 + $0x38] sm:$0xf]
    %v361 = vld [vmem:[%s3 + $0x3c] sm:$0xf]
    %v362 = vld [vmem:[%s4] sm:$0x1]
    %v364 = vperm.slane %v362, 0
    %v382 = vunpack.c.l.b16 %v346
    %v383 = vunpack.c.l.b16 %v347
    %v384 = vunpack.c.l.b16 %v348
    %v385 = vunpack.c.l.b16 %v349
    %v386 = vunpack.c.l.b16 %v350
    %v387 = vunpack.c.l.b16 %v351
    %v388 = vunpack.c.l.b16 %v352
    %v389 = vunpack.c.l.b16 %v353
    %v390 = vunpack.c.l.b16 %v354
    %v391 = vunpack.c.l.b16 %v355
    %v392 = vunpack.c.l.b16 %v356
    %v393 = vunpack.c.l.b16 %v357
    %v394 = vunpack.c.l.b16 %v358
    %v395 = vunpack.c.l.b16 %v359
    %v396 = vunpack.c.l.b16 %v360
    %v397 = vunpack.c.l.b16 %v361
    %v398 = vpack.c.b16 %v383, %v382
    %v399 = vpack.c.b16 %v385, %v384
    %v400 = vpack.c.b16 %v387, %v386
    %v401 = vpack.c.b16 %v389, %v388
    %v402 = vpack.c.b16 %v391, %v390
    %v403 = vpack.c.b16 %v393, %v392
    %v404 = vpack.c.b16 %v395, %v394
    %v405 = vpack.c.b16 %v397, %v396
    %414 = vmatpush.bf16.msra.mxu0 %v405
    %415 = vmatpush.bf16.msra.mxu0 %v404
    %416 = vmatpush.bf16.msra.mxu0 %v403
    %417 = vmatpush.bf16.msra.mxu0 %v402
    %418 = vmatpush.bf16.msra.mxu0 %v401
    %419 = vmatpush.bf16.msra.mxu0 %v400
    %420 = vmatpush.bf16.msra.mxu0 %v399
    %421 = vmatpush.bf16.msra.mxu0 %v398
    %422 = vmatmul.bf16.gmra.mxu0 %v330
    %v423 = vpop.f32.mrf.mxu0
    %v424 = vadd.f32 %v364, %v423
    %v425 = vpop.f32.mrf.mxu0
    %v426 = vadd.f32 %v364, %v425
    %427 = vmatmul.bf16.gmra.mxu0 %v331
    %v428 = vpop.f32.mrf.mxu0
    %v429 = vadd.f32 %v364, %v428
    %v430 = vpop.f32.mrf.mxu0
    %v431 = vadd.f32 %v364, %v430
    %432 = vmatmul.bf16.gmra.mxu0 %v332
    %v433 = vpop.f32.mrf.mxu0
    %v434 = vadd.f32 %v364, %v433
    %v435 = vpop.f32.mrf.mxu0
    %v436 = vadd.f32 %v364, %v435
    %437 = vmatmul.bf16.gmra.mxu0 %v333
    %v438 = vpop.f32.mrf.mxu0
    %v439 = vadd.f32 %v364, %v438
    %v440 = vpop.f32.mrf.mxu0
    %v441 = vadd.f32 %v364, %v440
    %442 = vmatmul.bf16.gmra.mxu0 %v334
    %v443 = vpop.f32.mrf.mxu0
    %v444 = vadd.f32 %v364, %v443
    %v445 = vpop.f32.mrf.mxu0
    %v446 = vadd.f32 %v364, %v445
    %447 = vmatmul.bf16.gmra.mxu0 %v335
    %v448 = vpop.f32.mrf.mxu0
    %v449 = vadd.f32 %v364, %v448
    %v450 = vpop.f32.mrf.mxu0
    %v451 = vadd.f32 %v364, %v450
    %452 = vmatmul.bf16.gmra.mxu0 %v336
    %v453 = vpop.f32.mrf.mxu0
    %v454 = vadd.f32 %v364, %v453
    %v455 = vpop.f32.mrf.mxu0
    %v456 = vadd.f32 %v364, %v455
    %457 = vmatmul.bf16.gmra.mxu0 %v337
    %v458 = vpop.f32.mrf.mxu0
    %v459 = vadd.f32 %v364, %v458
    %v460 = vpop.f32.mrf.mxu0
    %v461 = vadd.f32 %v364, %v460
    %462 = vmatmul.bf16.gmra.mxu0 %v338
    %v463 = vpop.f32.mrf.mxu0
    %v464 = vadd.f32 %v364, %v463
    %v465 = vpop.f32.mrf.mxu0
    %v466 = vadd.f32 %v364, %v465
    %467 = vmatmul.bf16.gmra.mxu0 %v339
    %v468 = vpop.f32.mrf.mxu0
    %v469 = vadd.f32 %v364, %v468
    %v470 = vpop.f32.mrf.mxu0
    %v471 = vadd.f32 %v364, %v470
    %472 = vmatmul.bf16.gmra.mxu0 %v340
    %v473 = vpop.f32.mrf.mxu0
    %v474 = vadd.f32 %v364, %v473
    %v475 = vpop.f32.mrf.mxu0
    %v476 = vadd.f32 %v364, %v475
    %477 = vmatmul.bf16.gmra.mxu0 %v341
    %v478 = vpop.f32.mrf.mxu0
    %v479 = vadd.f32 %v364, %v478
    %v480 = vpop.f32.mrf.mxu0
    %v481 = vadd.f32 %v364, %v480
    %482 = vmatmul.bf16.gmra.mxu0 %v342
    %v483 = vpop.f32.mrf.mxu0
    %v484 = vadd.f32 %v364, %v483
    %v485 = vpop.f32.mrf.mxu0
    %v486 = vadd.f32 %v364, %v485
    %487 = vmatmul.bf16.gmra.mxu0 %v343
    %v488 = vpop.f32.mrf.mxu0
    %v489 = vadd.f32 %v364, %v488
    %v490 = vpop.f32.mrf.mxu0
    %v491 = vadd.f32 %v364, %v490
    %492 = vmatmul.bf16.gmra.mxu0 %v344
    %v493 = vpop.f32.mrf.mxu0
    %v494 = vadd.f32 %v364, %v493
    %v495 = vpop.f32.mrf.mxu0
    %v496 = vadd.f32 %v364, %v495
    %497 = vmatmul.bf16.gmra.mxu0 %v345
    %v498 = vpop.f32.mrf.mxu0
    %v499 = vadd.f32 %v364, %v498
    %v500 = vpop.f32.mrf.mxu0
    %v501 = vadd.f32 %v364, %v500
    %502 = vdwg.mxu0
    %v503 = vmax.f32 %v424, 0.0
    %v504 = vmax.f32 %v426, 0.0
    %v505 = vmax.f32 %v429, 0.0
    %v506 = vmax.f32 %v431, 0.0
    %v507 = vmax.f32 %v434, 0.0
    %v508 = vmax.f32 %v436, 0.0
    %v509 = vmax.f32 %v439, 0.0
    %v510 = vmax.f32 %v441, 0.0
    %v511 = vmax.f32 %v444, 0.0
    %v512 = vmax.f32 %v446, 0.0
    %v513 = vmax.f32 %v449, 0.0
    %v514 = vmax.f32 %v451, 0.0
    %v515 = vmax.f32 %v454, 0.0
    %v516 = vmax.f32 %v456, 0.0
    %v517 = vmax.f32 %v459, 0.0
    %v518 = vmax.f32 %v461, 0.0
    %v519 = vmax.f32 %v464, 0.0
    %v520 = vmax.f32 %v466, 0.0
    %v521 = vmax.f32 %v469, 0.0
    %v522 = vmax.f32 %v471, 0.0
    %v523 = vmax.f32 %v474, 0.0
    %v524 = vmax.f32 %v476, 0.0
    %v525 = vmax.f32 %v479, 0.0
    %v526 = vmax.f32 %v481, 0.0
    %v527 = vmax.f32 %v484, 0.0
    %v528 = vmax.f32 %v486, 0.0
    %v529 = vmax.f32 %v489, 0.0
    %v530 = vmax.f32 %v491, 0.0
    %v531 = vmax.f32 %v494, 0.0
    %v532 = vmax.f32 %v496, 0.0
    %v533 = vmax.f32 %v499, 0.0
    %v534 = vmax.f32 %v501, 0.0
    %v535 = vpack.c.bf16 %v504, %v503
    %v536 = vpack.c.bf16 %v506, %v505
    %v537 = vpack.c.bf16 %v508, %v507
    %v538 = vpack.c.bf16 %v510, %v509
    %v539 = vpack.c.bf16 %v512, %v511
    %v540 = vpack.c.bf16 %v514, %v513
    %v541 = vpack.c.bf16 %v516, %v515
    %v542 = vpack.c.bf16 %v518, %v517
    %v543 = vpack.c.bf16 %v520, %v519
    %v544 = vpack.c.bf16 %v522, %v521
    %v545 = vpack.c.bf16 %v524, %v523
    %v546 = vpack.c.bf16 %v526, %v525
    %v547 = vpack.c.bf16 %v528, %v527
    %v548 = vpack.c.bf16 %v530, %v529
    %v549 = vpack.c.bf16 %v532, %v531
    %v550 = vpack.c.bf16 %v534, %v533
    %v551 = vld [vmem:[%s5] sm:$0xf]
    %v552 = vld [vmem:[%s5 + $0x4] sm:$0xf]
    %v553 = vld [vmem:[%s5 + $0x8] sm:$0xf]
    %v554 = vld [vmem:[%s5 + $0xc] sm:$0xf]
    %v555 = vld [vmem:[%s5 + $0x10] sm:$0xf]
    %v556 = vld [vmem:[%s5 + $0x14] sm:$0xf]
    %v557 = vld [vmem:[%s5 + $0x18] sm:$0xf]
    %v558 = vld [vmem:[%s5 + $0x1c] sm:$0xf]
    %v559 = vld [vmem:[%s5 + $0x20] sm:$0xf]
    %v560 = vld [vmem:[%s5 + $0x24] sm:$0xf]
    %v561 = vld [vmem:[%s5 + $0x28] sm:$0xf]
    %v562 = vld [vmem:[%s5 + $0x2c] sm:$0xf]
    %v563 = vld [vmem:[%s5 + $0x30] sm:$0xf]
    %v564 = vld [vmem:[%s5 + $0x34] sm:$0xf]
    %v565 = vld [vmem:[%s5 + $0x38] sm:$0xf]
    %v566 = vld [vmem:[%s5 + $0x3c] sm:$0xf]
    %v567 = vld [vmem:[%s6] sm:$0x1]
    %v569 = vperm.slane %v567, 0
    %v587 = vunpack.c.l.b16 %v551
    %v588 = vunpack.c.l.b16 %v552
    %v589 = vunpack.c.l.b16 %v553
    %v590 = vunpack.c.l.b16 %v554
    %v591 = vunpack.c.l.b16 %v555
    %v592 = vunpack.c.l.b16 %v556
    %v593 = vunpack.c.l.b16 %v557
    %v594 = vunpack.c.l.b16 %v558
    %v595 = vunpack.c.l.b16 %v559
    %v596 = vunpack.c.l.b16 %v560
    %v597 = vunpack.c.l.b16 %v561
    %v598 = vunpack.c.l.b16 %v562
    %v599 = vunpack.c.l.b16 %v563
    %v600 = vunpack.c.l.b16 %v564
    %v601 = vunpack.c.l.b16 %v565
    %v602 = vunpack.c.l.b16 %v566
    %v603 = vpack.c.b16 %v588, %v587
    %v604 = vpack.c.b16 %v590, %v589
    %v605 = vpack.c.b16 %v592, %v591
    %v606 = vpack.c.b16 %v594, %v593
    %v607 = vpack.c.b16 %v596, %v595
    %v608 = vpack.c.b16 %v598, %v597
    %v609 = vpack.c.b16 %v600, %v599
    %v610 = vpack.c.b16 %v602, %v601
    %619 = vmatpush.bf16.msra.mxu0 %v610
    %620 = vmatpush.bf16.msra.mxu0 %v609
    %621 = vmatpush.bf16.msra.mxu0 %v608
    %622 = vmatpush.bf16.msra.mxu0 %v607
    %623 = vmatpush.bf16.msra.mxu0 %v606
    %624 = vmatpush.bf16.msra.mxu0 %v605
    %625 = vmatpush.bf16.msra.mxu0 %v604
    %626 = vmatpush.bf16.msra.mxu0 %v603
    %627 = vmatmul.bf16.gmra.mxu0 %v535
    %v628 = vpop.f32.mrf.mxu0
    %v629 = vadd.f32 %v569, %v628
    %v630 = vpop.f32.mrf.mxu0
    %v631 = vadd.f32 %v569, %v630
    %632 = vmatmul.bf16.gmra.mxu0 %v536
    %v633 = vpop.f32.mrf.mxu0
    %v634 = vadd.f32 %v569, %v633
    %v635 = vpop.f32.mrf.mxu0
    %v636 = vadd.f32 %v569, %v635
    %637 = vmatmul.bf16.gmra.mxu0 %v537
    %v638 = vpop.f32.mrf.mxu0
    %v639 = vadd.f32 %v569, %v638
    %v640 = vpop.f32.mrf.mxu0
    %v641 = vadd.f32 %v569, %v640
    %642 = vmatmul.bf16.gmra.mxu0 %v538
    %v643 = vpop.f32.mrf.mxu0
    %v644 = vadd.f32 %v569, %v643
    %v645 = vpop.f32.mrf.mxu0
    %v646 = vadd.f32 %v569, %v645
    %647 = vmatmul.bf16.gmra.mxu0 %v539
    %v648 = vpop.f32.mrf.mxu0
    %v649 = vadd.f32 %v569, %v648
    %v650 = vpop.f32.mrf.mxu0
    %v651 = vadd.f32 %v569, %v650
    %652 = vmatmul.bf16.gmra.mxu0 %v540
    %v653 = vpop.f32.mrf.mxu0
    %v654 = vadd.f32 %v569, %v653
    %v655 = vpop.f32.mrf.mxu0
    %v656 = vadd.f32 %v569, %v655
    %657 = vmatmul.bf16.gmra.mxu0 %v541
    %v658 = vpop.f32.mrf.mxu0
    %v659 = vadd.f32 %v569, %v658
    %v660 = vpop.f32.mrf.mxu0
    %v661 = vadd.f32 %v569, %v660
    %662 = vmatmul.bf16.gmra.mxu0 %v542
    %v663 = vpop.f32.mrf.mxu0
    %v664 = vadd.f32 %v569, %v663
    %v665 = vpop.f32.mrf.mxu0
    %v666 = vadd.f32 %v569, %v665
    %667 = vmatmul.bf16.gmra.mxu0 %v543
    %v668 = vpop.f32.mrf.mxu0
    %v669 = vadd.f32 %v569, %v668
    %v670 = vpop.f32.mrf.mxu0
    %v671 = vadd.f32 %v569, %v670
    %672 = vmatmul.bf16.gmra.mxu0 %v544
    %v673 = vpop.f32.mrf.mxu0
    %v674 = vadd.f32 %v569, %v673
    %v675 = vpop.f32.mrf.mxu0
    %v676 = vadd.f32 %v569, %v675
    %677 = vmatmul.bf16.gmra.mxu0 %v545
    %v678 = vpop.f32.mrf.mxu0
    %v679 = vadd.f32 %v569, %v678
    %v680 = vpop.f32.mrf.mxu0
    %v681 = vadd.f32 %v569, %v680
    %682 = vmatmul.bf16.gmra.mxu0 %v546
    %v683 = vpop.f32.mrf.mxu0
    %v684 = vadd.f32 %v569, %v683
    %v685 = vpop.f32.mrf.mxu0
    %v686 = vadd.f32 %v569, %v685
    %687 = vmatmul.bf16.gmra.mxu0 %v547
    %v688 = vpop.f32.mrf.mxu0
    %v689 = vadd.f32 %v569, %v688
    %v690 = vpop.f32.mrf.mxu0
    %v691 = vadd.f32 %v569, %v690
    %692 = vmatmul.bf16.gmra.mxu0 %v548
    %v693 = vpop.f32.mrf.mxu0
    %v694 = vadd.f32 %v569, %v693
    %v695 = vpop.f32.mrf.mxu0
    %v696 = vadd.f32 %v569, %v695
    %697 = vmatmul.bf16.gmra.mxu0 %v549
    %v698 = vpop.f32.mrf.mxu0
    %v699 = vadd.f32 %v569, %v698
    %v700 = vpop.f32.mrf.mxu0
    %v701 = vadd.f32 %v569, %v700
    %702 = vmatmul.bf16.gmra.mxu0 %v550
    %v703 = vpop.f32.mrf.mxu0
    %v704 = vadd.f32 %v569, %v703
    %v705 = vpop.f32.mrf.mxu0
    %v706 = vadd.f32 %v569, %v705
    %707 = vdwg.mxu0
    %v708 = vsub.f32 0.0, %v629
    %v709 = vsub.f32 0.0, %v631
    %v710 = vsub.f32 0.0, %v634
    %v711 = vsub.f32 0.0, %v636
    %v712 = vsub.f32 0.0, %v639
    %v713 = vsub.f32 0.0, %v641
    %v714 = vsub.f32 0.0, %v644
    %v715 = vsub.f32 0.0, %v646
    %v716 = vsub.f32 0.0, %v649
    %v717 = vsub.f32 0.0, %v651
    %v718 = vsub.f32 0.0, %v654
    %v719 = vsub.f32 0.0, %v656
    %v720 = vsub.f32 0.0, %v659
    %v721 = vsub.f32 0.0, %v661
    %v722 = vsub.f32 0.0, %v664
    %v723 = vsub.f32 0.0, %v666
    %v724 = vsub.f32 0.0, %v669
    %v725 = vsub.f32 0.0, %v671
    %v726 = vsub.f32 0.0, %v674
    %v727 = vsub.f32 0.0, %v676
    %v728 = vsub.f32 0.0, %v679
    %v729 = vsub.f32 0.0, %v681
    %v730 = vsub.f32 0.0, %v684
    %v731 = vsub.f32 0.0, %v686
    %v732 = vsub.f32 0.0, %v689
    %v733 = vsub.f32 0.0, %v691
    %v734 = vsub.f32 0.0, %v694
    %v735 = vsub.f32 0.0, %v696
    %v736 = vsub.f32 0.0, %v699
    %v737 = vsub.f32 0.0, %v701
    %v738 = vsub.f32 0.0, %v704
    %v739 = vsub.f32 0.0, %v706
    %v740 = vmul.f32 %v708, 1.442695
    %v741 = vpow.pop %v740
    %v742 = vmul.f32 %v709, 1.442695
    %v743 = vpow.pop %v742
    %v744 = vmul.f32 %v710, 1.442695
    %v745 = vpow.pop %v744
    %v746 = vmul.f32 %v711, 1.442695
    %v747 = vpow.pop %v746
    %v748 = vmul.f32 %v712, 1.442695
    %v749 = vpow.pop %v748
    %v750 = vmul.f32 %v713, 1.442695
    %v751 = vpow.pop %v750
    %v752 = vmul.f32 %v714, 1.442695
    %v753 = vpow.pop %v752
    %v754 = vmul.f32 %v715, 1.442695
    %v755 = vpow.pop %v754
    %v756 = vmul.f32 %v716, 1.442695
    %v757 = vpow.pop %v756
    %v758 = vmul.f32 %v717, 1.442695
    %v759 = vpow.pop %v758
    %v760 = vmul.f32 %v718, 1.442695
    %v761 = vpow.pop %v760
    %v762 = vmul.f32 %v719, 1.442695
    %v763 = vpow.pop %v762
    %v764 = vmul.f32 %v720, 1.442695
    %v765 = vpow.pop %v764
    %v766 = vmul.f32 %v721, 1.442695
    %v767 = vpow.pop %v766
    %v768 = vmul.f32 %v722, 1.442695
    %v769 = vpow.pop %v768
    %v770 = vmul.f32 %v723, 1.442695
    %v771 = vpow.pop %v770
    %v772 = vmul.f32 %v724, 1.442695
    %v773 = vpow.pop %v772
    %v774 = vmul.f32 %v725, 1.442695
    %v775 = vpow.pop %v774
    %v776 = vmul.f32 %v726, 1.442695
    %v777 = vpow.pop %v776
    %v778 = vmul.f32 %v727, 1.442695
    %v779 = vpow.pop %v778
    %v780 = vmul.f32 %v728, 1.442695
    %v781 = vpow.pop %v780
    %v782 = vmul.f32 %v729, 1.442695
    %v783 = vpow.pop %v782
    %v784 = vmul.f32 %v730, 1.442695
    %v785 = vpow.pop %v784
    %v786 = vmul.f32 %v731, 1.442695
    %v787 = vpow.pop %v786
    %v788 = vmul.f32 %v732, 1.442695
    %v789 = vpow.pop %v788
    %v790 = vmul.f32 %v733, 1.442695
    %v791 = vpow.pop %v790
    %v792 = vmul.f32 %v734, 1.442695
    %v793 = vpow.pop %v792
    %v794 = vmul.f32 %v735, 1.442695
    %v795 = vpow.pop %v794
    %v796 = vmul.f32 %v736, 1.442695
    %v797 = vpow.pop %v796
    %v798 = vmul.f32 %v737, 1.442695
    %v799 = vpow.pop %v798
    %v800 = vmul.f32 %v738, 1.442695
    %v801 = vpow.pop %v800
    %v802 = vmul.f32 %v739, 1.442695
    %v803 = vpow.pop %v802
    %v804 = vadd.f32 %v741, 1.0
    %v805 = vadd.f32 %v743, 1.0
    %v806 = vadd.f32 %v745, 1.0
    %v807 = vadd.f32 %v747, 1.0
    %v808 = vadd.f32 %v749, 1.0
    %v809 = vadd.f32 %v751, 1.0
    %v810 = vadd.f32 %v753, 1.0
    %v811 = vadd.f32 %v755, 1.0
    %v812 = vadd.f32 %v757, 1.0
    %v813 = vadd.f32 %v759, 1.0
    %v814 = vadd.f32 %v761, 1.0
    %v815 = vadd.f32 %v763, 1.0
    %v816 = vadd.f32 %v765, 1.0
    %v817 = vadd.f32 %v767, 1.0
    %v818 = vadd.f32 %v769, 1.0
    %v819 = vadd.f32 %v771, 1.0
    %v820 = vadd.f32 %v773, 1.0
    %v821 = vadd.f32 %v775, 1.0
    %v822 = vadd.f32 %v777, 1.0
    %v823 = vadd.f32 %v779, 1.0
    %v824 = vadd.f32 %v781, 1.0
    %v825 = vadd.f32 %v783, 1.0
    %v826 = vadd.f32 %v785, 1.0
    %v827 = vadd.f32 %v787, 1.0
    %v828 = vadd.f32 %v789, 1.0
    %v829 = vadd.f32 %v791, 1.0
    %v830 = vadd.f32 %v793, 1.0
    %v831 = vadd.f32 %v795, 1.0
    %v832 = vadd.f32 %v797, 1.0
    %v833 = vadd.f32 %v799, 1.0
    %v834 = vadd.f32 %v801, 1.0
    %v835 = vadd.f32 %v803, 1.0
    %v836 = vrcp.pop %v804
    %v837 = vmul.f32 %v804, %v836
    %v838 = vsub.f32 1.0, %v837
    %v839 = vmul.f32 %v836, %v838
    %v840 = vadd.f32 %v836, %v839
    %vm841 = vweird.f32 %v804
    %vm842 = vweird.f32 %v836
    %vm843 = vmor %vm841, %vm842
    %v844 = vsel %vm843, %v836, %v840
    %v845 = vand.u32 2147483647, %v804
    %vm846 = vcmp.eq.f32.partialorder %v845, 8.507059e+37
    %v847 = vand.u32 %v804, 2147483648
    %v848 = vor.u32 1.1754944e-38, %v847
    %v849 = vsel %vm846, %v848, %v844
    %v850 = vmul.f32 1.0, %v849
    %v851 = vrcp.pop %v805
    %v852 = vmul.f32 %v805, %v851
    %v853 = vsub.f32 1.0, %v852
    %v854 = vmul.f32 %v851, %v853
    %v855 = vadd.f32 %v851, %v854
    %vm856 = vweird.f32 %v805
    %vm857 = vweird.f32 %v851
    %vm858 = vmor %vm856, %vm857
    %v859 = vsel %vm858, %v851, %v855
    %v860 = vand.u32 2147483647, %v805
    %vm861 = vcmp.eq.f32.partialorder %v860, 8.507059e+37
    %v862 = vand.u32 %v805, 2147483648
    %v863 = vor.u32 1.1754944e-38, %v862
    %v864 = vsel %vm861, %v863, %v859
    %v865 = vmul.f32 1.0, %v864
    %v866 = vrcp.pop %v806
    %v867 = vmul.f32 %v806, %v866
    %v868 = vsub.f32 1.0, %v867
    %v869 = vmul.f32 %v866, %v868
    %v870 = vadd.f32 %v866, %v869
    %vm871 = vweird.f32 %v806
    %vm872 = vweird.f32 %v866
    %vm873 = vmor %vm871, %vm872
    %v874 = vsel %vm873, %v866, %v870
    %v875 = vand.u32 2147483647, %v806
    %vm876 = vcmp.eq.f32.partialorder %v875, 8.507059e+37
    %v877 = vand.u32 %v806, 2147483648
    %v878 = vor.u32 1.1754944e-38, %v877
    %v879 = vsel %vm876, %v878, %v874
    %v880 = vmul.f32 1.0, %v879
    %v881 = vrcp.pop %v807
    %v882 = vmul.f32 %v807, %v881
    %v883 = vsub.f32 1.0, %v882
    %v884 = vmul.f32 %v881, %v883
    %v885 = vadd.f32 %v881, %v884
    %vm886 = vweird.f32 %v807
    %vm887 = vweird.f32 %v881
    %vm888 = vmor %vm886, %vm887
    %v889 = vsel %vm888, %v881, %v885
    %v890 = vand.u32 2147483647, %v807
    %vm891 = vcmp.eq.f32.partialorder %v890, 8.507059e+37
    %v892 = vand.u32 %v807, 2147483648
    %v893 = vor.u32 1.1754944e-38, %v892
    %v894 = vsel %vm891, %v893, %v889
    %v895 = vmul.f32 1.0, %v894
    %v896 = vrcp.pop %v808
    %v897 = vmul.f32 %v808, %v896
    %v898 = vsub.f32 1.0, %v897
    %v899 = vmul.f32 %v896, %v898
    %v900 = vadd.f32 %v896, %v899
    %vm901 = vweird.f32 %v808
    %vm902 = vweird.f32 %v896
    %vm903 = vmor %vm901, %vm902
    %v904 = vsel %vm903, %v896, %v900
    %v905 = vand.u32 2147483647, %v808
    %vm906 = vcmp.eq.f32.partialorder %v905, 8.507059e+37
    %v907 = vand.u32 %v808, 2147483648
    %v908 = vor.u32 1.1754944e-38, %v907
    %v909 = vsel %vm906, %v908, %v904
    %v910 = vmul.f32 1.0, %v909
    %v911 = vrcp.pop %v809
    %v912 = vmul.f32 %v809, %v911
    %v913 = vsub.f32 1.0, %v912
    %v914 = vmul.f32 %v911, %v913
    %v915 = vadd.f32 %v911, %v914
    %vm916 = vweird.f32 %v809
    %vm917 = vweird.f32 %v911
    %vm918 = vmor %vm916, %vm917
    %v919 = vsel %vm918, %v911, %v915
    %v920 = vand.u32 2147483647, %v809
    %vm921 = vcmp.eq.f32.partialorder %v920, 8.507059e+37
    %v922 = vand.u32 %v809, 2147483648
    %v923 = vor.u32 1.1754944e-38, %v922
    %v924 = vsel %vm921, %v923, %v919
    %v925 = vmul.f32 1.0, %v924
    %v926 = vrcp.pop %v810
    %v927 = vmul.f32 %v810, %v926
    %v928 = vsub.f32 1.0, %v927
    %v929 = vmul.f32 %v926, %v928
    %v930 = vadd.f32 %v926, %v929
    %vm931 = vweird.f32 %v810
    %vm932 = vweird.f32 %v926
    %vm933 = vmor %vm931, %vm932
    %v934 = vsel %vm933, %v926, %v930
    %v935 = vand.u32 2147483647, %v810
    %vm936 = vcmp.eq.f32.partialorder %v935, 8.507059e+37
    %v937 = vand.u32 %v810, 2147483648
    %v938 = vor.u32 1.1754944e-38, %v937
    %v939 = vsel %vm936, %v938, %v934
    %v940 = vmul.f32 1.0, %v939
    %v941 = vrcp.pop %v811
    %v942 = vmul.f32 %v811, %v941
    %v943 = vsub.f32 1.0, %v942
    %v944 = vmul.f32 %v941, %v943
    %v945 = vadd.f32 %v941, %v944
    %vm946 = vweird.f32 %v811
    %vm947 = vweird.f32 %v941
    %vm948 = vmor %vm946, %vm947
    %v949 = vsel %vm948, %v941, %v945
    %v950 = vand.u32 2147483647, %v811
    %vm951 = vcmp.eq.f32.partialorder %v950, 8.507059e+37
    %v952 = vand.u32 %v811, 2147483648
    %v953 = vor.u32 1.1754944e-38, %v952
    %v954 = vsel %vm951, %v953, %v949
    %v955 = vmul.f32 1.0, %v954
    %v956 = vrcp.pop %v812
    %v957 = vmul.f32 %v812, %v956
    %v958 = vsub.f32 1.0, %v957
    %v959 = vmul.f32 %v956, %v958
    %v960 = vadd.f32 %v956, %v959
    %vm961 = vweird.f32 %v812
    %vm962 = vweird.f32 %v956
    %vm963 = vmor %vm961, %vm962
    %v964 = vsel %vm963, %v956, %v960
    %v965 = vand.u32 2147483647, %v812
    %vm966 = vcmp.eq.f32.partialorder %v965, 8.507059e+37
    %v967 = vand.u32 %v812, 2147483648
    %v968 = vor.u32 1.1754944e-38, %v967
    %v969 = vsel %vm966, %v968, %v964
    %v970 = vmul.f32 1.0, %v969
    %v971 = vrcp.pop %v813
    %v972 = vmul.f32 %v813, %v971
    %v973 = vsub.f32 1.0, %v972
    %v974 = vmul.f32 %v971, %v973
    %v975 = vadd.f32 %v971, %v974
    %vm976 = vweird.f32 %v813
    %vm977 = vweird.f32 %v971
    %vm978 = vmor %vm976, %vm977
    %v979 = vsel %vm978, %v971, %v975
    %v980 = vand.u32 2147483647, %v813
    %vm981 = vcmp.eq.f32.partialorder %v980, 8.507059e+37
    %v982 = vand.u32 %v813, 2147483648
    %v983 = vor.u32 1.1754944e-38, %v982
    %v984 = vsel %vm981, %v983, %v979
    %v985 = vmul.f32 1.0, %v984
    %v986 = vrcp.pop %v814
    %v987 = vmul.f32 %v814, %v986
    %v988 = vsub.f32 1.0, %v987
    %v989 = vmul.f32 %v986, %v988
    %v990 = vadd.f32 %v986, %v989
    %vm991 = vweird.f32 %v814
    %vm992 = vweird.f32 %v986
    %vm993 = vmor %vm991, %vm992
    %v994 = vsel %vm993, %v986, %v990
    %v995 = vand.u32 2147483647, %v814
    %vm996 = vcmp.eq.f32.partialorder %v995, 8.507059e+37
    %v997 = vand.u32 %v814, 2147483648
    %v998 = vor.u32 1.1754944e-38, %v997
    %v999 = vsel %vm996, %v998, %v994
    %v1000 = vmul.f32 1.0, %v999
    %v1001 = vrcp.pop %v815
    %v1002 = vmul.f32 %v815, %v1001
    %v1003 = vsub.f32 1.0, %v1002
    %v1004 = vmul.f32 %v1001, %v1003
    %v1005 = vadd.f32 %v1001, %v1004
    %vm1006 = vweird.f32 %v815
    %vm1007 = vweird.f32 %v1001
    %vm1008 = vmor %vm1006, %vm1007
    %v1009 = vsel %vm1008, %v1001, %v1005
    %v1010 = vand.u32 2147483647, %v815
    %vm1011 = vcmp.eq.f32.partialorder %v1010, 8.507059e+37
    %v1012 = vand.u32 %v815, 2147483648
    %v1013 = vor.u32 1.1754944e-38, %v1012
    %v1014 = vsel %vm1011, %v1013, %v1009
    %v1015 = vmul.f32 1.0, %v1014
    %v1016 = vrcp.pop %v816
    %v1017 = vmul.f32 %v816, %v1016
    %v1018 = vsub.f32 1.0, %v1017
    %v1019 = vmul.f32 %v1016, %v1018
    %v1020 = vadd.f32 %v1016, %v1019
    %vm1021 = vweird.f32 %v816
    %vm1022 = vweird.f32 %v1016
    %vm1023 = vmor %vm1021, %vm1022
    %v1024 = vsel %vm1023, %v1016, %v1020
    %v1025 = vand.u32 2147483647, %v816
    %vm1026 = vcmp.eq.f32.partialorder %v1025, 8.507059e+37
    %v1027 = vand.u32 %v816, 2147483648
    %v1028 = vor.u32 1.1754944e-38, %v1027
    %v1029 = vsel %vm1026, %v1028, %v1024
    %v1030 = vmul.f32 1.0, %v1029
    %v1031 = vrcp.pop %v817
    %v1032 = vmul.f32 %v817, %v1031
    %v1033 = vsub.f32 1.0, %v1032
    %v1034 = vmul.f32 %v1031, %v1033
    %v1035 = vadd.f32 %v1031, %v1034
    %vm1036 = vweird.f32 %v817
    %vm1037 = vweird.f32 %v1031
    %vm1038 = vmor %vm1036, %vm1037
    %v1039 = vsel %vm1038, %v1031, %v1035
    %v1040 = vand.u32 2147483647, %v817
    %vm1041 = vcmp.eq.f32.partialorder %v1040, 8.507059e+37
    %v1042 = vand.u32 %v817, 2147483648
    %v1043 = vor.u32 1.1754944e-38, %v1042
    %v1044 = vsel %vm1041, %v1043, %v1039
    %v1045 = vmul.f32 1.0, %v1044
    %v1046 = vrcp.pop %v818
    %v1047 = vmul.f32 %v818, %v1046
    %v1048 = vsub.f32 1.0, %v1047
    %v1049 = vmul.f32 %v1046, %v1048
    %v1050 = vadd.f32 %v1046, %v1049
    %vm1051 = vweird.f32 %v818
    %vm1052 = vweird.f32 %v1046
    %vm1053 = vmor %vm1051, %vm1052
    %v1054 = vsel %vm1053, %v1046, %v1050
    %v1055 = vand.u32 2147483647, %v818
    %vm1056 = vcmp.eq.f32.partialorder %v1055, 8.507059e+37
    %v1057 = vand.u32 %v818, 2147483648
    %v1058 = vor.u32 1.1754944e-38, %v1057
    %v1059 = vsel %vm1056, %v1058, %v1054
    %v1060 = vmul.f32 1.0, %v1059
    %v1061 = vrcp.pop %v819
    %v1062 = vmul.f32 %v819, %v1061
    %v1063 = vsub.f32 1.0, %v1062
    %v1064 = vmul.f32 %v1061, %v1063
    %v1065 = vadd.f32 %v1061, %v1064
    %vm1066 = vweird.f32 %v819
    %vm1067 = vweird.f32 %v1061
    %vm1068 = vmor %vm1066, %vm1067
    %v1069 = vsel %vm1068, %v1061, %v1065
    %v1070 = vand.u32 2147483647, %v819
    %vm1071 = vcmp.eq.f32.partialorder %v1070, 8.507059e+37
    %v1072 = vand.u32 %v819, 2147483648
    %v1073 = vor.u32 1.1754944e-38, %v1072
    %v1074 = vsel %vm1071, %v1073, %v1069
    %v1075 = vmul.f32 1.0, %v1074
    %v1076 = vrcp.pop %v820
    %v1077 = vmul.f32 %v820, %v1076
    %v1078 = vsub.f32 1.0, %v1077
    %v1079 = vmul.f32 %v1076, %v1078
    %v1080 = vadd.f32 %v1076, %v1079
    %vm1081 = vweird.f32 %v820
    %vm1082 = vweird.f32 %v1076
    %vm1083 = vmor %vm1081, %vm1082
    %v1084 = vsel %vm1083, %v1076, %v1080
    %v1085 = vand.u32 2147483647, %v820
    %vm1086 = vcmp.eq.f32.partialorder %v1085, 8.507059e+37
    %v1087 = vand.u32 %v820, 2147483648
    %v1088 = vor.u32 1.1754944e-38, %v1087
    %v1089 = vsel %vm1086, %v1088, %v1084
    %v1090 = vmul.f32 1.0, %v1089
    %v1091 = vrcp.pop %v821
    %v1092 = vmul.f32 %v821, %v1091
    %v1093 = vsub.f32 1.0, %v1092
    %v1094 = vmul.f32 %v1091, %v1093
    %v1095 = vadd.f32 %v1091, %v1094
    %vm1096 = vweird.f32 %v821
    %vm1097 = vweird.f32 %v1091
    %vm1098 = vmor %vm1096, %vm1097
    %v1099 = vsel %vm1098, %v1091, %v1095
    %v1100 = vand.u32 2147483647, %v821
    %vm1101 = vcmp.eq.f32.partialorder %v1100, 8.507059e+37
    %v1102 = vand.u32 %v821, 2147483648
    %v1103 = vor.u32 1.1754944e-38, %v1102
    %v1104 = vsel %vm1101, %v1103, %v1099
    %v1105 = vmul.f32 1.0, %v1104
    %v1106 = vrcp.pop %v822
    %v1107 = vmul.f32 %v822, %v1106
    %v1108 = vsub.f32 1.0, %v1107
    %v1109 = vmul.f32 %v1106, %v1108
    %v1110 = vadd.f32 %v1106, %v1109
    %vm1111 = vweird.f32 %v822
    %vm1112 = vweird.f32 %v1106
    %vm1113 = vmor %vm1111, %vm1112
    %v1114 = vsel %vm1113, %v1106, %v1110
    %v1115 = vand.u32 2147483647, %v822
    %vm1116 = vcmp.eq.f32.partialorder %v1115, 8.507059e+37
    %v1117 = vand.u32 %v822, 2147483648
    %v1118 = vor.u32 1.1754944e-38, %v1117
    %v1119 = vsel %vm1116, %v1118, %v1114
    %v1120 = vmul.f32 1.0, %v1119
    %v1121 = vrcp.pop %v823
    %v1122 = vmul.f32 %v823, %v1121
    %v1123 = vsub.f32 1.0, %v1122
    %v1124 = vmul.f32 %v1121, %v1123
    %v1125 = vadd.f32 %v1121, %v1124
    %vm1126 = vweird.f32 %v823
    %vm1127 = vweird.f32 %v1121
    %vm1128 = vmor %vm1126, %vm1127
    %v1129 = vsel %vm1128, %v1121, %v1125
    %v1130 = vand.u32 2147483647, %v823
    %vm1131 = vcmp.eq.f32.partialorder %v1130, 8.507059e+37
    %v1132 = vand.u32 %v823, 2147483648
    %v1133 = vor.u32 1.1754944e-38, %v1132
    %v1134 = vsel %vm1131, %v1133, %v1129
    %v1135 = vmul.f32 1.0, %v1134
    %v1136 = vrcp.pop %v824
    %v1137 = vmul.f32 %v824, %v1136
    %v1138 = vsub.f32 1.0, %v1137
    %v1139 = vmul.f32 %v1136, %v1138
    %v1140 = vadd.f32 %v1136, %v1139
    %vm1141 = vweird.f32 %v824
    %vm1142 = vweird.f32 %v1136
    %vm1143 = vmor %vm1141, %vm1142
    %v1144 = vsel %vm1143, %v1136, %v1140
    %v1145 = vand.u32 2147483647, %v824
    %vm1146 = vcmp.eq.f32.partialorder %v1145, 8.507059e+37
    %v1147 = vand.u32 %v824, 2147483648
    %v1148 = vor.u32 1.1754944e-38, %v1147
    %v1149 = vsel %vm1146, %v1148, %v1144
    %v1150 = vmul.f32 1.0, %v1149
    %v1151 = vrcp.pop %v825
    %v1152 = vmul.f32 %v825, %v1151
    %v1153 = vsub.f32 1.0, %v1152
    %v1154 = vmul.f32 %v1151, %v1153
    %v1155 = vadd.f32 %v1151, %v1154
    %vm1156 = vweird.f32 %v825
    %vm1157 = vweird.f32 %v1151
    %vm1158 = vmor %vm1156, %vm1157
    %v1159 = vsel %vm1158, %v1151, %v1155
    %v1160 = vand.u32 2147483647, %v825
    %vm1161 = vcmp.eq.f32.partialorder %v1160, 8.507059e+37
    %v1162 = vand.u32 %v825, 2147483648
    %v1163 = vor.u32 1.1754944e-38, %v1162
    %v1164 = vsel %vm1161, %v1163, %v1159
    %v1165 = vmul.f32 1.0, %v1164
    %v1166 = vrcp.pop %v826
    %v1167 = vmul.f32 %v826, %v1166
    %v1168 = vsub.f32 1.0, %v1167
    %v1169 = vmul.f32 %v1166, %v1168
    %v1170 = vadd.f32 %v1166, %v1169
    %vm1171 = vweird.f32 %v826
    %vm1172 = vweird.f32 %v1166
    %vm1173 = vmor %vm1171, %vm1172
    %v1174 = vsel %vm1173, %v1166, %v1170
    %v1175 = vand.u32 2147483647, %v826
    %vm1176 = vcmp.eq.f32.partialorder %v1175, 8.507059e+37
    %v1177 = vand.u32 %v826, 2147483648
    %v1178 = vor.u32 1.1754944e-38, %v1177
    %v1179 = vsel %vm1176, %v1178, %v1174
    %v1180 = vmul.f32 1.0, %v1179
    %v1181 = vrcp.pop %v827
    %v1182 = vmul.f32 %v827, %v1181
    %v1183 = vsub.f32 1.0, %v1182
    %v1184 = vmul.f32 %v1181, %v1183
    %v1185 = vadd.f32 %v1181, %v1184
    %vm1186 = vweird.f32 %v827
    %vm1187 = vweird.f32 %v1181
    %vm1188 = vmor %vm1186, %vm1187
    %v1189 = vsel %vm1188, %v1181, %v1185
    %v1190 = vand.u32 2147483647, %v827
    %vm1191 = vcmp.eq.f32.partialorder %v1190, 8.507059e+37
    %v1192 = vand.u32 %v827, 2147483648
    %v1193 = vor.u32 1.1754944e-38, %v1192
    %v1194 = vsel %vm1191, %v1193, %v1189
    %v1195 = vmul.f32 1.0, %v1194
    %v1196 = vrcp.pop %v828
    %v1197 = vmul.f32 %v828, %v1196
    %v1198 = vsub.f32 1.0, %v1197
    %v1199 = vmul.f32 %v1196, %v1198
    %v1200 = vadd.f32 %v1196, %v1199
    %vm1201 = vweird.f32 %v828
    %vm1202 = vweird.f32 %v1196
    %vm1203 = vmor %vm1201, %vm1202
    %v1204 = vsel %vm1203, %v1196, %v1200
    %v1205 = vand.u32 2147483647, %v828
    %vm1206 = vcmp.eq.f32.partialorder %v1205, 8.507059e+37
    %v1207 = vand.u32 %v828, 2147483648
    %v1208 = vor.u32 1.1754944e-38, %v1207
    %v1209 = vsel %vm1206, %v1208, %v1204
    %v1210 = vmul.f32 1.0, %v1209
    %v1211 = vrcp.pop %v829
    %v1212 = vmul.f32 %v829, %v1211
    %v1213 = vsub.f32 1.0, %v1212
    %v1214 = vmul.f32 %v1211, %v1213
    %v1215 = vadd.f32 %v1211, %v1214
    %vm1216 = vweird.f32 %v829
    %vm1217 = vweird.f32 %v1211
    %vm1218 = vmor %vm1216, %vm1217
    %v1219 = vsel %vm1218, %v1211, %v1215
    %v1220 = vand.u32 2147483647, %v829
    %vm1221 = vcmp.eq.f32.partialorder %v1220, 8.507059e+37
    %v1222 = vand.u32 %v829, 2147483648
    %v1223 = vor.u32 1.1754944e-38, %v1222
    %v1224 = vsel %vm1221, %v1223, %v1219
    %v1225 = vmul.f32 1.0, %v1224
    %v1226 = vrcp.pop %v830
    %v1227 = vmul.f32 %v830, %v1226
    %v1228 = vsub.f32 1.0, %v1227
    %v1229 = vmul.f32 %v1226, %v1228
    %v1230 = vadd.f32 %v1226, %v1229
    %vm1231 = vweird.f32 %v830
    %vm1232 = vweird.f32 %v1226
    %vm1233 = vmor %vm1231, %vm1232
    %v1234 = vsel %vm1233, %v1226, %v1230
    %v1235 = vand.u32 2147483647, %v830
    %vm1236 = vcmp.eq.f32.partialorder %v1235, 8.507059e+37
    %v1237 = vand.u32 %v830, 2147483648
    %v1238 = vor.u32 1.1754944e-38, %v1237
    %v1239 = vsel %vm1236, %v1238, %v1234
    %v1240 = vmul.f32 1.0, %v1239
    %v1241 = vrcp.pop %v831
    %v1242 = vmul.f32 %v831, %v1241
    %v1243 = vsub.f32 1.0, %v1242
    %v1244 = vmul.f32 %v1241, %v1243
    %v1245 = vadd.f32 %v1241, %v1244
    %vm1246 = vweird.f32 %v831
    %vm1247 = vweird.f32 %v1241
    %vm1248 = vmor %vm1246, %vm1247
    %v1249 = vsel %vm1248, %v1241, %v1245
    %v1250 = vand.u32 2147483647, %v831
    %vm1251 = vcmp.eq.f32.partialorder %v1250, 8.507059e+37
    %v1252 = vand.u32 %v831, 2147483648
    %v1253 = vor.u32 1.1754944e-38, %v1252
    %v1254 = vsel %vm1251, %v1253, %v1249
    %v1255 = vmul.f32 1.0, %v1254
    %v1256 = vrcp.pop %v832
    %v1257 = vmul.f32 %v832, %v1256
    %v1258 = vsub.f32 1.0, %v1257
    %v1259 = vmul.f32 %v1256, %v1258
    %v1260 = vadd.f32 %v1256, %v1259
    %vm1261 = vweird.f32 %v832
    %vm1262 = vweird.f32 %v1256
    %vm1263 = vmor %vm1261, %vm1262
    %v1264 = vsel %vm1263, %v1256, %v1260
    %v1265 = vand.u32 2147483647, %v832
    %vm1266 = vcmp.eq.f32.partialorder %v1265, 8.507059e+37
    %v1267 = vand.u32 %v832, 2147483648
    %v1268 = vor.u32 1.1754944e-38, %v1267
    %v1269 = vsel %vm1266, %v1268, %v1264
    %v1270 = vmul.f32 1.0, %v1269
    %v1271 = vrcp.pop %v833
    %v1272 = vmul.f32 %v833, %v1271
    %v1273 = vsub.f32 1.0, %v1272
    %v1274 = vmul.f32 %v1271, %v1273
    %v1275 = vadd.f32 %v1271, %v1274
    %vm1276 = vweird.f32 %v833
    %vm1277 = vweird.f32 %v1271
    %vm1278 = vmor %vm1276, %vm1277
    %v1279 = vsel %vm1278, %v1271, %v1275
    %v1280 = vand.u32 2147483647, %v833
    %vm1281 = vcmp.eq.f32.partialorder %v1280, 8.507059e+37
    %v1282 = vand.u32 %v833, 2147483648
    %v1283 = vor.u32 1.1754944e-38, %v1282
    %v1284 = vsel %vm1281, %v1283, %v1279
    %v1285 = vmul.f32 1.0, %v1284
    %v1286 = vrcp.pop %v834
    %v1287 = vmul.f32 %v834, %v1286
    %v1288 = vsub.f32 1.0, %v1287
    %v1289 = vmul.f32 %v1286, %v1288
    %v1290 = vadd.f32 %v1286, %v1289
    %vm1291 = vweird.f32 %v834
    %vm1292 = vweird.f32 %v1286
    %vm1293 = vmor %vm1291, %vm1292
    %v1294 = vsel %vm1293, %v1286, %v1290
    %v1295 = vand.u32 2147483647, %v834
    %vm1296 = vcmp.eq.f32.partialorder %v1295, 8.507059e+37
    %v1297 = vand.u32 %v834, 2147483648
    %v1298 = vor.u32 1.1754944e-38, %v1297
    %v1299 = vsel %vm1296, %v1298, %v1294
    %v1300 = vmul.f32 1.0, %v1299
    %v1301 = vrcp.pop %v835
    %v1302 = vmul.f32 %v835, %v1301
    %v1303 = vsub.f32 1.0, %v1302
    %v1304 = vmul.f32 %v1301, %v1303
    %v1305 = vadd.f32 %v1301, %v1304
    %vm1306 = vweird.f32 %v835
    %vm1307 = vweird.f32 %v1301
    %vm1308 = vmor %vm1306, %vm1307
    %v1309 = vsel %vm1308, %v1301, %v1305
    %v1310 = vand.u32 2147483647, %v835
    %vm1311 = vcmp.eq.f32.partialorder %v1310, 8.507059e+37
    %v1312 = vand.u32 %v835, 2147483648
    %v1313 = vor.u32 1.1754944e-38, %v1312
    %v1314 = vsel %vm1311, %v1313, %v1309
    %v1315 = vmul.f32 1.0, %v1314
    %v1316 = vpack.c.bf16 %v850, %v850
    %v1317 = vpack.c.bf16 %v865, %v865
    %v1318 = vpack.c.bf16 %v880, %v880
    %v1319 = vpack.c.bf16 %v895, %v895
    %v1320 = vpack.c.bf16 %v910, %v910
    %v1321 = vpack.c.bf16 %v925, %v925
    %v1322 = vpack.c.bf16 %v940, %v940
    %v1323 = vpack.c.bf16 %v955, %v955
    %v1324 = vpack.c.bf16 %v970, %v970
    %v1325 = vpack.c.bf16 %v985, %v985
    %v1326 = vpack.c.bf16 %v1000, %v1000
    %v1327 = vpack.c.bf16 %v1015, %v1015
    %v1328 = vpack.c.bf16 %v1030, %v1030
    %v1329 = vpack.c.bf16 %v1045, %v1045
    %v1330 = vpack.c.bf16 %v1060, %v1060
    %v1331 = vpack.c.bf16 %v1075, %v1075
    %v1332 = vpack.c.bf16 %v1090, %v1090
    %v1333 = vpack.c.bf16 %v1105, %v1105
    %v1334 = vpack.c.bf16 %v1120, %v1120
    %v1335 = vpack.c.bf16 %v1135, %v1135
    %v1336 = vpack.c.bf16 %v1150, %v1150
    %v1337 = vpack.c.bf16 %v1165, %v1165
    %v1338 = vpack.c.bf16 %v1180, %v1180
    %v1339 = vpack.c.bf16 %v1195, %v1195
    %v1340 = vpack.c.bf16 %v1210, %v1210
    %v1341 = vpack.c.bf16 %v1225, %v1225
    %v1342 = vpack.c.bf16 %v1240, %v1240
    %v1343 = vpack.c.bf16 %v1255, %v1255
    %v1344 = vpack.c.bf16 %v1270, %v1270
    %v1345 = vpack.c.bf16 %v1285, %v1285
    %v1346 = vpack.c.bf16 %v1300, %v1300
    %v1347 = vpack.c.bf16 %v1315, %v1315
    %1348 = vst [vmem:[#allocation2] sm:$0xf] %v1316
    %1349 = vst [vmem:[#allocation2 + $0x4] sm:$0xf] %v1317
    %1350 = vst [vmem:[#allocation2 + $0x8] sm:$0xf] %v1318
    %1351 = vst [vmem:[#allocation2 + $0xc] sm:$0xf] %v1319
    %1352 = vst [vmem:[#allocation2 + $0x10] sm:$0xf] %v1320
    %1353 = vst [vmem:[#allocation2 + $0x14] sm:$0xf] %v1321
    %1354 = vst [vmem:[#allocation2 + $0x18] sm:$0xf] %v1322
    %1355 = vst [vmem:[#allocation2 + $0x1c] sm:$0xf] %v1323
    %1356 = vst [vmem:[#allocation2 + $0x20] sm:$0xf] %v1324
    %1357 = vst [vmem:[#allocation2 + $0x24] sm:$0xf] %v1325
    %1358 = vst [vmem:[#allocation2 + $0x28] sm:$0xf] %v1326
    %1359 = vst [vmem:[#allocation2 + $0x2c] sm:$0xf] %v1327
    %1360 = vst [vmem:[#allocation2 + $0x30] sm:$0xf] %v1328
    %1361 = vst [vmem:[#allocation2 + $0x34] sm:$0xf] %v1329
    %1362 = vst [vmem:[#allocation2 + $0x38] sm:$0xf] %v1330
    %1363 = vst [vmem:[#allocation2 + $0x3c] sm:$0xf] %v1331
    %1364 = vst [vmem:[#allocation2 + $0x40] sm:$0xf] %v1332
    %1365 = vst [vmem:[#allocation2 + $0x44] sm:$0xf] %v1333
    %1366 = vst [vmem:[#allocation2 + $0x48] sm:$0xf] %v1334
    %1367 = vst [vmem:[#allocation2 + $0x4c] sm:$0xf] %v1335
    %1368 = vst [vmem:[#allocation2 + $0x50] sm:$0xf] %v1336
    %1369 = vst [vmem:[#allocation2 + $0x54] sm:$0xf] %v1337
    %1370 = vst [vmem:[#allocation2 + $0x58] sm:$0xf] %v1338
    %1371 = vst [vmem:[#allocation2 + $0x5c] sm:$0xf] %v1339
    %1372 = vst [vmem:[#allocation2 + $0x60] sm:$0xf] %v1340
    %1373 = vst [vmem:[#allocation2 + $0x64] sm:$0xf] %v1341
    %1374 = vst [vmem:[#allocation2 + $0x68] sm:$0xf] %v1342
    %1375 = vst [vmem:[#allocation2 + $0x6c] sm:$0xf] %v1343
    %1376 = vst [vmem:[#allocation2 + $0x70] sm:$0xf] %v1344
    %1377 = vst [vmem:[#allocation2 + $0x74] sm:$0xf] %v1345
    %1378 = vst [vmem:[#allocation2 + $0x78] sm:$0xf] %v1346
    %1379 = vst [vmem:[#allocation2 + $0x7c] sm:$0xf] %v1347
    // Predicated region
    $region30: #{tpu_custom_call.1} parent=1 // pred_check
      _
    $region31: #{tpu_custom_call.1} parent=1 // pred_check_branch
      %1381 = sbr.rel (0) target = $region33
    $region32: #{tpu_custom_call.1} parent=1 // pred_region
      %1383 = vsyncadd [#allocation3], 0
      %s1384 = sshll.u32 [#allocation2], 4
      %s1385 = int_to_ptr.vmem [resolvable:$true] %s1384
      %s1386 = sshll.u32 %s7, 4
      %s1387 = int_to_ptr.hbm [resolvable:$true] %s1386
      %1392 = dma.vmem_to_hbm [thread:$0]  %s1385, 2048, %s1387, [#allocation3], 64, 64, 4
    $region33: #{tpu_custom_call.1} parent=1 // pred_fallthru
      _
    // Predicated region
    $region34: #{tpu_custom_call.1} parent=1 // pred_check
      _
    $region35: #{tpu_custom_call.1} parent=1 // pred_check_branch
      %1394 = sbr.rel (0) target = $region37
    $region36: #{tpu_custom_call.1} parent=1 // pred_region
      %1396 = dma.done [#allocation3], 2048
    $region37: #{tpu_custom_call.1} parent=1 // pred_fallthru
      _
    %1397 = vsyncpa [#allocation3], 1

// kernel: tpu_custom_call.1
$region0: #{tpu_custom_call.1}
  #allocation0 [shape = 'u32[]', space=smem, size = 0x4, offset = 0x4, fixed_abs, tag = 'smem constant byte address 0x4 - core index']
  #allocation1 [shape = 'u32[72,128]{1,0:T(1,128)}', space=vmem, size = 0x9000, scoped, tag = 'internal scratch']
  %s0 = inlined_call_operand.vmem [shape: bf16[256,32], index: 0, kind: input, shape index: {}]
  %s1 = inlined_call_operand.vmem [shape: bf16[32,128], index: 1, kind: input, shape index: {}]
  %s2 = inlined_call_operand.vmem [shape: f32[1,128], index: 2, kind: input, shape index: {}]
  %s3 = inlined_call_operand.vmem [shape: bf16[128,128], index: 3, kind: input, shape index: {}]
  %s4 = inlined_call_operand.vmem [shape: f32[1,128], index: 4, kind: input, shape index: {}]
  %s5 = inlined_call_operand.vmem [shape: bf16[128,128], index: 5, kind: input, shape index: {}]
  %s6 = inlined_call_operand.vmem [shape: f32[1,128], index: 6, kind: input, shape index: {}]
  %s7 = inlined_call_operand.hbm [shape: bf16[256,128], index: 7, kind: output, shape index: {}]
  %s8 = sld [smem:[#allocation0]]
  $region38: #{tpu_custom_call.1} parent=0
    _
  %s10 = ssub.s32 1, %s8
  %s11 = scalar_select 0, %s10, %s8
  $region1: #{tpu_custom_call.1} parent=0
    #allocation2 [shape = 'u8[65536]{0}', space=vmem, size = 0x10000, scoped, tag = 'output window, operand 0, single buffered']
    #allocation3 [shape = 's32[1]{0}', space=sflag, size = 0x4, scoped, tag = 'scoped memory for tpu_custom_call.1']
    %12 = vsyncpa [#allocation3], 0
    // Predicated region
    $region2: #{tpu_custom_call.1} parent=1 // pred_check
      _
    $region3: #{tpu_custom_call.1} parent=1 // pred_check_branch
      %14 = sbr.rel (0) target = $region5
    $region4: #{tpu_custom_call.1} parent=1 // pred_region
      _
    $region5: #{tpu_custom_call.1} parent=1 // pred_fallthru
      _
    // Predicated region
    $region6: #{tpu_custom_call.1} parent=1 // pred_check
      _
    $region7: #{tpu_custom_call.1} parent=1 // pred_check_branch
      %16 = sbr.rel (0) target = $region9
    $region8: #{tpu_custom_call.1} parent=1 // pred_region
      _
    $region9: #{tpu_custom_call.1} parent=1 // pred_fallthru
      _
    // Predicated region
    $region10: #{tpu_custom_call.1} parent=1 // pred_check
      _
    $region11: #{tpu_custom_call.1} parent=1 // pred_check_branch
      %18 = sbr.rel (0) target = $region13
    $region12: #{tpu_custom_call.1} parent=1 // pred_region
      _
    $region13: #{tpu_custom_call.1} parent=1 // pred_fallthru
      _
    // Predicated region
    $region14: #{tpu_custom_call.1} parent=1 // pred_check
      _
    $region15: #{tpu_custom_call.1} parent=1 // pred_check_branch
      %20 = sbr.rel (0) target = $region17
    $region16: #{tpu_custom_call.1} parent=1 // pred_region
      _
    $region17: #{tpu_custom_call.1} parent=1 // pred_fallthru
      _
    // Predicated region
    $region18: #{tpu_custom_call.1} parent=1 // pred_check
      _
    $region19: #{tpu_custom_call.1} parent=1 // pred_check_branch
      %22 = sbr.rel (0) target = $region21
    $region20: #{tpu_custom_call.1} parent=1 // pred_region
      _
    $region21: #{tpu_custom_call.1} parent=1 // pred_fallthru
      _
    // Predicated region
    $region22: #{tpu_custom_call.1} parent=1 // pred_check
      _
    $region23: #{tpu_custom_call.1} parent=1 // pred_check_branch
      %24 = sbr.rel (0) target = $region25
    $region24: #{tpu_custom_call.1} parent=1 // pred_region
      _
    $region25: #{tpu_custom_call.1} parent=1 // pred_fallthru
      _
    // Predicated region
    $region26: #{tpu_custom_call.1} parent=1 // pred_check
      _
    $region27: #{tpu_custom_call.1} parent=1 // pred_check_branch
      %26 = sbr.rel (0) target = $region29
    $region28: #{tpu_custom_call.1} parent=1 // pred_region
      _
    $region29: #{tpu_custom_call.1} parent=1 // pred_fallthru
      _
    %v28 = vld [vmem:[%s0] sm:$0xf]
    %v29 = vld [vmem:[%s0 + $0x4] sm:$0xf]
    %v30 = vld [vmem:[%s0 + $0x8] sm:$0xf]
    %v31 = vld [vmem:[%s0 + $0xc] sm:$0xf]
    %v32 = vld [vmem:[%s0 + $0x10] sm:$0xf]
    %v33 = vld [vmem:[%s0 + $0x14] sm:$0xf]
    %v34 = vld [vmem:[%s0 + $0x18] sm:$0xf]
    %v35 = vld [vmem:[%s0 + $0x1c] sm:$0xf]
    %v36 = vld [vmem:[%s0 + $0x20] sm:$0xf]
    %v37 = vld [vmem:[%s0 + $0x24] sm:$0xf]
    %v38 = vld [vmem:[%s0 + $0x28] sm:$0xf]
    %v39 = vld [vmem:[%s0 + $0x2c] sm:$0xf]
    %v40 = vld [vmem:[%s0 + $0x30] sm:$0xf]
    %v41 = vld [vmem:[%s0 + $0x34] sm:$0xf]
    %v42 = vld [vmem:[%s0 + $0x38] sm:$0xf]
    %v43 = vld [vmem:[%s0 + $0x3c] sm:$0xf]
    %v44 = vld [vmem:[%s0 + $0x40] sm:$0xf]
    %v45 = vld [vmem:[%s0 + $0x44] sm:$0xf]
    %v46 = vld [vmem:[%s0 + $0x48] sm:$0xf]
    %v47 = vld [vmem:[%s0 + $0x4c] sm:$0xf]
    %v48 = vld [vmem:[%s0 + $0x50] sm:$0xf]
    %v49 = vld [vmem:[%s0 + $0x54] sm:$0xf]
    %v50 = vld [vmem:[%s0 + $0x58] sm:$0xf]
    %v51 = vld [vmem:[%s0 + $0x5c] sm:$0xf]
    %v52 = vld [vmem:[%s0 + $0x60] sm:$0xf]
    %v53 = vld [vmem:[%s0 + $0x64] sm:$0xf]
    %v54 = vld [vmem:[%s0 + $0x68] sm:$0xf]
    %v55 = vld [vmem:[%s0 + $0x6c] sm:$0xf]
    %v56 = vld [vmem:[%s0 + $0x70] sm:$0xf]
    %v57 = vld [vmem:[%s0 + $0x74] sm:$0xf]
    %v58 = vld [vmem:[%s0 + $0x78] sm:$0xf]
    %v59 = vld [vmem:[%s0 + $0x7c] sm:$0xf]
    %v60 = vld [vmem:[%s1] sm:$0xf]
    %v61 = vld [vmem:[%s1 + $0x4] sm:$0xf]
    %v62 = vld [vmem:[%s1 + $0x8] sm:$0xf]
    %v63 = vld [vmem:[%s1 + $0xc] sm:$0xf]
    %v64 = vld [vmem:[%s2] sm:$0x1]
    %v66 = vperm.slane %v64, 0
    %v100 = vunpack.c.l.b16 %v28
    %v101 = vunpack.c.l.b16 %v29
    %v102 = vunpack.c.l.b16 %v30
    %v103 = vunpack.c.l.b16 %v31
    %v104 = vunpack.c.l.b16 %v32
    %v105 = vunpack.c.l.b16 %v33
    %v106 = vunpack.c.l.b16 %v34
    %v107 = vunpack.c.l.b16 %v35
    %v108 = vunpack.c.l.b16 %v36
    %v109 = vunpack.c.l.b16 %v37
    %v110 = vunpack.c.l.b16 %v38
    %v111 = vunpack.c.l.b16 %v39
    %v112 = vunpack.c.l.b16 %v40
    %v113 = vunpack.c.l.b16 %v41
    %v114 = vunpack.c.l.b16 %v42
    %v115 = vunpack.c.l.b16 %v43
    %v116 = vunpack.c.l.b16 %v44
    %v117 = vunpack.c.l.b16 %v45
    %v118 = vunpack.c.l.b16 %v46
    %v119 = vunpack.c.l.b16 %v47
    %v120 = vunpack.c.l.b16 %v48
    %v121 = vunpack.c.l.b16 %v49
    %v122 = vunpack.c.l.b16 %v50
    %v123 = vunpack.c.l.b16 %v51
    %v124 = vunpack.c.l.b16 %v52
    %v125 = vunpack.c.l.b16 %v53
    %v126 = vunpack.c.l.b16 %v54
    %v127 = vunpack.c.l.b16 %v55
    %v128 = vunpack.c.l.b16 %v56
    %v129 = vunpack.c.l.b16 %v57
    %v130 = vunpack.c.l.b16 %v58
    %v131 = vunpack.c.l.b16 %v59
    %v132 = vpack.c.b16 %v101, %v100
    %v133 = vpack.c.b16 %v103, %v102
    %v134 = vpack.c.b16 %v105, %v104
    %v135 = vpack.c.b16 %v107, %v106
    %v136 = vpack.c.b16 %v109, %v108
    %v137 = vpack.c.b16 %v111, %v110
    %v138 = vpack.c.b16 %v113, %v112
    %v139 = vpack.c.b16 %v115, %v114
    %v140 = vpack.c.b16 %v117, %v116
    %v141 = vpack.c.b16 %v119, %v118
    %v142 = vpack.c.b16 %v121, %v120
    %v143 = vpack.c.b16 %v123, %v122
    %v144 = vpack.c.b16 %v125, %v124
    %v145 = vpack.c.b16 %v127, %v126
    %v146 = vpack.c.b16 %v129, %v128
    %v147 = vpack.c.b16 %v131, %v130
    %v152 = vunpack.c.l.b16 %v60
    %v153 = vunpack.c.l.b16 %v61
    %v154 = vunpack.c.l.b16 %v62
    %v155 = vunpack.c.l.b16 %v63
    %v156 = vpack.c.b16 %v153, %v152
    %v157 = vpack.c.b16 %v155, %v154
    %vm160 = vcmask 261120
    %v162 = vsel %vm160, %v132, 0
    %v165 = vsel %vm160, %v133, 0
    %v168 = vsel %vm160, %v134, 0
    %v171 = vsel %vm160, %v135, 0
    %v174 = vsel %vm160, %v136, 0
    %v177 = vsel %vm160, %v137, 0
    %v180 = vsel %vm160, %v138, 0
    %v183 = vsel %vm160, %v139, 0
    %v186 = vsel %vm160, %v140, 0
    %v189 = vsel %vm160, %v141, 0
    %v192 = vsel %vm160, %v142, 0
    %v195 = vsel %vm160, %v143, 0
    %v198 = vsel %vm160, %v144, 0
    %v201 = vsel %vm160, %v145, 0
    %v204 = vsel %vm160, %v146, 0
    %v207 = vsel %vm160, %v147, 0
    %209 = vmatpush.bf16.msra.mxu0 0
    %210 = vmatpush.bf16.msra.mxu0 0
    %211 = vmatpush.bf16.msra.mxu0 0
    %212 = vmatpush.bf16.msra.mxu0 0
    %213 = vmatpush.bf16.msra.mxu0 0
    %214 = vmatpush.bf16.msra.mxu0 0
    %215 = vmatpush.bf16.msra.mxu0 %v157
    %216 = vmatpush.bf16.msra.mxu0 %v156
    %217 = vmatmul.bf16.gmra.mxu0 %v162
    %v218 = vpop.f32.mrf.mxu0
    %v219 = vadd.f32 %v66, %v218
    %v220 = vpop.f32.mrf.mxu0
    %v221 = vadd.f32 %v66, %v220
    %222 = vmatmul.bf16.gmra.mxu0 %v165
    %v223 = vpop.f32.mrf.mxu0
    %v224 = vadd.f32 %v66, %v223
    %v225 = vpop.f32.mrf.mxu0
    %v226 = vadd.f32 %v66, %v225
    %227 = vmatmul.bf16.gmra.mxu0 %v168
    %v228 = vpop.f32.mrf.mxu0
    %v229 = vadd.f32 %v66, %v228
    %v230 = vpop.f32.mrf.mxu0
    %v231 = vadd.f32 %v66, %v230
    %232 = vmatmul.bf16.gmra.mxu0 %v171
    %v233 = vpop.f32.mrf.mxu0
    %v234 = vadd.f32 %v66, %v233
    %v235 = vpop.f32.mrf.mxu0
    %v236 = vadd.f32 %v66, %v235
    %237 = vmatmul.bf16.gmra.mxu0 %v174
    %v238 = vpop.f32.mrf.mxu0
    %v239 = vadd.f32 %v66, %v238
    %v240 = vpop.f32.mrf.mxu0
    %v241 = vadd.f32 %v66, %v240
    %242 = vmatmul.bf16.gmra.mxu0 %v177
    %v243 = vpop.f32.mrf.mxu0
    %v244 = vadd.f32 %v66, %v243
    %v245 = vpop.f32.mrf.mxu0
    %v246 = vadd.f32 %v66, %v245
    %247 = vmatmul.bf16.gmra.mxu0 %v180
    %v248 = vpop.f32.mrf.mxu0
    %v249 = vadd.f32 %v66, %v248
    %v250 = vpop.f32.mrf.mxu0
    %v251 = vadd.f32 %v66, %v250
    %252 = vmatmul.bf16.gmra.mxu0 %v183
    %v253 = vpop.f32.mrf.mxu0
    %v254 = vadd.f32 %v66, %v253
    %v255 = vpop.f32.mrf.mxu0
    %v256 = vadd.f32 %v66, %v255
    %257 = vmatmul.bf16.gmra.mxu0 %v186
    %v258 = vpop.f32.mrf.mxu0
    %v259 = vadd.f32 %v66, %v258
    %v260 = vpop.f32.mrf.mxu0
    %v261 = vadd.f32 %v66, %v260
    %262 = vmatmul.bf16.gmra.mxu0 %v189
    %v263 = vpop.f32.mrf.mxu0
    %v264 = vadd.f32 %v66, %v263
    %v265 = vpop.f32.mrf.mxu0
    %v266 = vadd.f32 %v66, %v265
    %267 = vmatmul.bf16.gmra.mxu0 %v192
    %v268 = vpop.f32.mrf.mxu0
    %v269 = vadd.f32 %v66, %v268
    %v270 = vpop.f32.mrf.mxu0
    %v271 = vadd.f32 %v66, %v270
    %272 = vmatmul.bf16.gmra.mxu0 %v195
    %v273 = vpop.f32.mrf.mxu0
    %v274 = vadd.f32 %v66, %v273
    %v275 = vpop.f32.mrf.mxu0
    %v276 = vadd.f32 %v66, %v275
    %277 = vmatmul.bf16.gmra.mxu0 %v198
    %v278 = vpop.f32.mrf.mxu0
    %v279 = vadd.f32 %v66, %v278
    %v280 = vpop.f32.mrf.mxu0
    %v281 = vadd.f32 %v66, %v280
    %282 = vmatmul.bf16.gmra.mxu0 %v201
    %v283 = vpop.f32.mrf.mxu0
    %v284 = vadd.f32 %v66, %v283
    %v285 = vpop.f32.mrf.mxu0
    %v286 = vadd.f32 %v66, %v285
    %287 = vmatmul.bf16.gmra.mxu0 %v204
    %v288 = vpop.f32.mrf.mxu0
    %v289 = vadd.f32 %v66, %v288
    %v290 = vpop.f32.mrf.mxu0
    %v291 = vadd.f32 %v66, %v290
    %292 = vmatmul.bf16.gmra.mxu0 %v207
    %v293 = vpop.f32.mrf.mxu0
    %v294 = vadd.f32 %v66, %v293
    %v295 = vpop.f32.mrf.mxu0
    %v296 = vadd.f32 %v66, %v295
    %297 = vdwg.mxu0
    %v298 = vmax.f32 %v219, 0.0
    %v299 = vmax.f32 %v221, 0.0
    %v300 = vmax.f32 %v224, 0.0
    %v301 = vmax.f32 %v226, 0.0
    %v302 = vmax.f32 %v229, 0.0
    %v303 = vmax.f32 %v231, 0.0
    %v304 = vmax.f32 %v234, 0.0
    %v305 = vmax.f32 %v236, 0.0
    %v306 = vmax.f32 %v239, 0.0
    %v307 = vmax.f32 %v241, 0.0
    %v308 = vmax.f32 %v244, 0.0
    %v309 = vmax.f32 %v246, 0.0
    %v310 = vmax.f32 %v249, 0.0
    %v311 = vmax.f32 %v251, 0.0
    %v312 = vmax.f32 %v254, 0.0
    %v313 = vmax.f32 %v256, 0.0
    %v314 = vmax.f32 %v259, 0.0
    %v315 = vmax.f32 %v261, 0.0
    %v316 = vmax.f32 %v264, 0.0
    %v317 = vmax.f32 %v266, 0.0
    %v318 = vmax.f32 %v269, 0.0
    %v319 = vmax.f32 %v271, 0.0
    %v320 = vmax.f32 %v274, 0.0
    %v321 = vmax.f32 %v276, 0.0
    %v322 = vmax.f32 %v279, 0.0
    %v323 = vmax.f32 %v281, 0.0
    %v324 = vmax.f32 %v284, 0.0
    %v325 = vmax.f32 %v286, 0.0
    %v326 = vmax.f32 %v289, 0.0
    %v327 = vmax.f32 %v291, 0.0
    %v328 = vmax.f32 %v294, 0.0
    %v329 = vmax.f32 %v296, 0.0
    %v330 = vpack.c.bf16 %v299, %v298
    %v331 = vpack.c.bf16 %v301, %v300
    %v332 = vpack.c.bf16 %v303, %v302
    %v333 = vpack.c.bf16 %v305, %v304
    %v334 = vpack.c.bf16 %v307, %v306
    %v335 = vpack.c.bf16 %v309, %v308
    %v336 = vpack.c.bf16 %v311, %v310
    %v337 = vpack.c.bf16 %v313, %v312
    %v338 = vpack.c.bf16 %v315, %v314
    %v339 = vpack.c.bf16 %v317, %v316
    %v340 = vpack.c.bf16 %v319, %v318
    %v341 = vpack.c.bf16 %v321, %v320
    %v342 = vpack.c.bf16 %v323, %v322
    %v343 = vpack.c.bf16 %v325, %v324
    %v344 = vpack.c.bf16 %v327, %v326
    %v345 = vpack.c.bf16 %v329, %v328
    %v346 = vld [vmem:[%s3] sm:$0xf]
    %v347 = vld [vmem:[%s3 + $0x4] sm:$0xf]
    %v348 = vld [vmem:[%s3 + $0x8] sm:$0xf]
    %v349 = vld [vmem:[%s3 + $0xc] sm:$0xf]
    %v350 = vld [vmem:[%s3 + $0x10] sm:$0xf]
    %v351 = vld [vmem:[%s3 + $0x14] sm:$0xf]
    %v352 = vld [vmem:[%s3 + $0x18] sm:$0xf]
    %v353 = vld [vmem:[%s3 + $0x1c] sm:$0xf]
    %v354 = vld [vmem:[%s3 + $0x20] sm:$0xf]
    %v355 = vld [vmem:[%s3 + $0x24] sm:$0xf]
    %v356 = vld [vmem:[%s3 + $0x28] sm:$0xf]
    %v357 = vld [vmem:[%s3 + $0x2c] sm:$0xf]
    %v358 = vld [vmem:[%s3 + $0x30] sm:$0xf]
    %v359 = vld [vmem:[%s3 + $0x34] sm:$0xf]
    %v360 = vld [vmem:[%s3 + $0x38] sm:$0xf]
    %v361 = vld [vmem:[%s3 + $0x3c] sm:$0xf]
    %v362 = vld [vmem:[%s4] sm:$0x1]
    %v364 = vperm.slane %v362, 0
    %v382 = vunpack.c.l.b16 %v346
    %v383 = vunpack.c.l.b16 %v347
    %v384 = vunpack.c.l.b16 %v348
    %v385 = vunpack.c.l.b16 %v349
    %v386 = vunpack.c.l.b16 %v350
    %v387 = vunpack.c.l.b16 %v351
    %v388 = vunpack.c.l.b16 %v352
    %v389 = vunpack.c.l.b16 %v353
    %v390 = vunpack.c.l.b16 %v354
    %v391 = vunpack.c.l.b16 %v355
    %v392 = vunpack.c.l.b16 %v356
    %v393 = vunpack.c.l.b16 %v357
    %v394 = vunpack.c.l.b16 %v358
    %v395 = vunpack.c.l.b16 %v359
    %v396 = vunpack.c.l.b16 %v360
    %v397 = vunpack.c.l.b16 %v361
    %v398 = vpack.c.b16 %v383, %v382
    %v399 = vpack.c.b16 %v385, %v384
    %v400 = vpack.c.b16 %v387, %v386
    %v401 = vpack.c.b16 %v389, %v388
    %v402 = vpack.c.b16 %v391, %v390
    %v403 = vpack.c.b16 %v393, %v392
    %v404 = vpack.c.b16 %v395, %v394
    %v405 = vpack.c.b16 %v397, %v396
    %414 = vmatpush.bf16.msra.mxu0 %v405
    %415 = vmatpush.bf16.msra.mxu0 %v404
    %416 = vmatpush.bf16.msra.mxu0 %v403
    %417 = vmatpush.bf16.msra.mxu0 %v402
    %418 = vmatpush.bf16.msra.mxu0 %v401
    %419 = vmatpush.bf16.msra.mxu0 %v400
    %420 = vmatpush.bf16.msra.mxu0 %v399
    %421 = vmatpush.bf16.msra.mxu0 %v398
    %422 = vmatmul.bf16.gmra.mxu0 %v330
    %v423 = vpop.f32.mrf.mxu0
    %v424 = vadd.f32 %v364, %v423
    %v425 = vpop.f32.mrf.mxu0
    %v426 = vadd.f32 %v364, %v425
    %427 = vmatmul.bf16.gmra.mxu0 %v331
    %v428 = vpop.f32.mrf.mxu0
    %v429 = vadd.f32 %v364, %v428
    %v430 = vpop.f32.mrf.mxu0
    %v431 = vadd.f32 %v364, %v430
    %432 = vmatmul.bf16.gmra.mxu0 %v332
    %v433 = vpop.f32.mrf.mxu0
    %v434 = vadd.f32 %v364, %v433
    %v435 = vpop.f32.mrf.mxu0
    %v436 = vadd.f32 %v364, %v435
    %437 = vmatmul.bf16.gmra.mxu0 %v333
    %v438 = vpop.f32.mrf.mxu0
    %v439 = vadd.f32 %v364, %v438
    %v440 = vpop.f32.mrf.mxu0
    %v441 = vadd.f32 %v364, %v440
    %442 = vmatmul.bf16.gmra.mxu0 %v334
    %v443 = vpop.f32.mrf.mxu0
    %v444 = vadd.f32 %v364, %v443
    %v445 = vpop.f32.mrf.mxu0
    %v446 = vadd.f32 %v364, %v445
    %447 = vmatmul.bf16.gmra.mxu0 %v335
    %v448 = vpop.f32.mrf.mxu0
    %v449 = vadd.f32 %v364, %v448
    %v450 = vpop.f32.mrf.mxu0
    %v451 = vadd.f32 %v364, %v450
    %452 = vmatmul.bf16.gmra.mxu0 %v336
    %v453 = vpop.f32.mrf.mxu0
    %v454 = vadd.f32 %v364, %v453
    %v455 = vpop.f32.mrf.mxu0
    %v456 = vadd.f32 %v364, %v455
    %457 = vmatmul.bf16.gmra.mxu0 %v337
    %v458 = vpop.f32.mrf.mxu0
    %v459 = vadd.f32 %v364, %v458
    %v460 = vpop.f32.mrf.mxu0
    %v461 = vadd.f32 %v364, %v460
    %462 = vmatmul.bf16.gmra.mxu0 %v338
    %v463 = vpop.f32.mrf.mxu0
    %v464 = vadd.f32 %v364, %v463
    %v465 = vpop.f32.mrf.mxu0
    %v466 = vadd.f32 %v364, %v465
    %467 = vmatmul.bf16.gmra.mxu0 %v339
    %v468 = vpop.f32.mrf.mxu0
    %v469 = vadd.f32 %v364, %v468
    %v470 = vpop.f32.mrf.mxu0
    %v471 = vadd.f32 %v364, %v470
    %472 = vmatmul.bf16.gmra.mxu0 %v340
    %v473 = vpop.f32.mrf.mxu0
    %v474 = vadd.f32 %v364, %v473
    %v475 = vpop.f32.mrf.mxu0
    %v476 = vadd.f32 %v364, %v475
    %477 = vmatmul.bf16.gmra.mxu0 %v341
    %v478 = vpop.f32.mrf.mxu0
    %v479 = vadd.f32 %v364, %v478
    %v480 = vpop.f32.mrf.mxu0
    %v481 = vadd.f32 %v364, %v480
    %482 = vmatmul.bf16.gmra.mxu0 %v342
    %v483 = vpop.f32.mrf.mxu0
    %v484 = vadd.f32 %v364, %v483
    %v485 = vpop.f32.mrf.mxu0
    %v486 = vadd.f32 %v364, %v485
    %487 = vmatmul.bf16.gmra.mxu0 %v343
    %v488 = vpop.f32.mrf.mxu0
    %v489 = vadd.f32 %v364, %v488
    %v490 = vpop.f32.mrf.mxu0
    %v491 = vadd.f32 %v364, %v490
    %492 = vmatmul.bf16.gmra.mxu0 %v344
    %v493 = vpop.f32.mrf.mxu0
    %v494 = vadd.f32 %v364, %v493
    %v495 = vpop.f32.mrf.mxu0
    %v496 = vadd.f32 %v364, %v495
    %497 = vmatmul.bf16.gmra.mxu0 %v345
    %v498 = vpop.f32.mrf.mxu0
    %v499 = vadd.f32 %v364, %v498
    %v500 = vpop.f32.mrf.mxu0
    %v501 = vadd.f32 %v364, %v500
    %502 = vdwg.mxu0
    %v503 = vmax.f32 %v424, 0.0
    %v504 = vmax.f32 %v426, 0.0
    %v505 = vmax.f32 %v429, 0.0
    %v506 = vmax.f32 %v431, 0.0
    %v507 = vmax.f32 %v434, 0.0
    %v508 = vmax.f32 %v436, 0.0
    %v509 = vmax.f32 %v439, 0.0
    %v510 = vmax.f32 %v441, 0.0
    %v511 = vmax.f32 %v444, 0.0
    %v512 = vmax.f32 %v446, 0.0
    %v513 = vmax.f32 %v449, 0.0
    %v514 = vmax.f32 %v451, 0.0
    %v515 = vmax.f32 %v454, 0.0
    %v516 = vmax.f32 %v456, 0.0
    %v517 = vmax.f32 %v459, 0.0
    %v518 = vmax.f32 %v461, 0.0
    %v519 = vmax.f32 %v464, 0.0
    %v520 = vmax.f32 %v466, 0.0
    %v521 = vmax.f32 %v469, 0.0
    %v522 = vmax.f32 %v471, 0.0
    %v523 = vmax.f32 %v474, 0.0
    %v524 = vmax.f32 %v476, 0.0
    %v525 = vmax.f32 %v479, 0.0
    %v526 = vmax.f32 %v481, 0.0
    %v527 = vmax.f32 %v484, 0.0
    %v528 = vmax.f32 %v486, 0.0
    %v529 = vmax.f32 %v489, 0.0
    %v530 = vmax.f32 %v491, 0.0
    %v531 = vmax.f32 %v494, 0.0
    %v532 = vmax.f32 %v496, 0.0
    %v533 = vmax.f32 %v499, 0.0
    %v534 = vmax.f32 %v501, 0.0
    %v535 = vpack.c.bf16 %v504, %v503
    %v536 = vpack.c.bf16 %v506, %v505
    %v537 = vpack.c.bf16 %v508, %v507
    %v538 = vpack.c.bf16 %v510, %v509
    %v539 = vpack.c.bf16 %v512, %v511
    %v540 = vpack.c.bf16 %v514, %v513
    %v541 = vpack.c.bf16 %v516, %v515
    %v542 = vpack.c.bf16 %v518, %v517
    %v543 = vpack.c.bf16 %v520, %v519
    %v544 = vpack.c.bf16 %v522, %v521
    %v545 = vpack.c.bf16 %v524, %v523
    %v546 = vpack.c.bf16 %v526, %v525
    %v547 = vpack.c.bf16 %v528, %v527
    %v548 = vpack.c.bf16 %v530, %v529
    %v549 = vpack.c.bf16 %v532, %v531
    %v550 = vpack.c.bf16 %v534, %v533
    %v551 = vld [vmem:[%s5] sm:$0xf]
    %v552 = vld [vmem:[%s5 + $0x4] sm:$0xf]
    %v553 = vld [vmem:[%s5 + $0x8] sm:$0xf]
    %v554 = vld [vmem:[%s5 + $0xc] sm:$0xf]
    %v555 = vld [vmem:[%s5 + $0x10] sm:$0xf]
    %v556 = vld [vmem:[%s5 + $0x14] sm:$0xf]
    %v557 = vld [vmem:[%s5 + $0x18] sm:$0xf]
    %v558 = vld [vmem:[%s5 + $0x1c] sm:$0xf]
    %v559 = vld [vmem:[%s5 + $0x20] sm:$0xf]
    %v560 = vld [vmem:[%s5 + $0x24] sm:$0xf]
    %v561 = vld [vmem:[%s5 + $0x28] sm:$0xf]
    %v562 = vld [vmem:[%s5 + $0x2c] sm:$0xf]
    %v563 = vld [vmem:[%s5 + $0x30] sm:$0xf]
    %v564 = vld [vmem:[%s5 + $0x34] sm:$0xf]
    %v565 = vld [vmem:[%s5 + $0x38] sm:$0xf]
    %v566 = vld [vmem:[%s5 + $0x3c] sm:$0xf]
    %v567 = vld [vmem:[%s6] sm:$0x1]
    %v569 = vperm.slane %v567, 0
    %v587 = vunpack.c.l.b16 %v551
    %v588 = vunpack.c.l.b16 %v552
    %v589 = vunpack.c.l.b16 %v553
    %v590 = vunpack.c.l.b16 %v554
    %v591 = vunpack.c.l.b16 %v555
    %v592 = vunpack.c.l.b16 %v556
    %v593 = vunpack.c.l.b16 %v557
    %v594 = vunpack.c.l.b16 %v558
    %v595 = vunpack.c.l.b16 %v559
    %v596 = vunpack.c.l.b16 %v560
    %v597 = vunpack.c.l.b16 %v561
    %v598 = vunpack.c.l.b16 %v562
    %v599 = vunpack.c.l.b16 %v563
    %v600 = vunpack.c.l.b16 %v564
    %v601 = vunpack.c.l.b16 %v565
    %v602 = vunpack.c.l.b16 %v566
    %v603 = vpack.c.b16 %v588, %v587
    %v604 = vpack.c.b16 %v590, %v589
    %v605 = vpack.c.b16 %v592, %v591
    %v606 = vpack.c.b16 %v594, %v593
    %v607 = vpack.c.b16 %v596, %v595
    %v608 = vpack.c.b16 %v598, %v597
    %v609 = vpack.c.b16 %v600, %v599
    %v610 = vpack.c.b16 %v602, %v601
    %619 = vmatpush.bf16.msra.mxu0 %v610
    %620 = vmatpush.bf16.msra.mxu0 %v609
    %621 = vmatpush.bf16.msra.mxu0 %v608
    %622 = vmatpush.bf16.msra.mxu0 %v607
    %623 = vmatpush.bf16.msra.mxu0 %v606
    %624 = vmatpush.bf16.msra.mxu0 %v605
    %625 = vmatpush.bf16.msra.mxu0 %v604
    %626 = vmatpush.bf16.msra.mxu0 %v603
    %627 = vmatmul.bf16.gmra.mxu0 %v535
    %v628 = vpop.f32.mrf.mxu0
    %v629 = vadd.f32 %v569, %v628
    %v630 = vpop.f32.mrf.mxu0
    %v631 = vadd.f32 %v569, %v630
    %632 = vmatmul.bf16.gmra.mxu0 %v536
    %v633 = vpop.f32.mrf.mxu0
    %v634 = vadd.f32 %v569, %v633
    %v635 = vpop.f32.mrf.mxu0
    %v636 = vadd.f32 %v569, %v635
    %637 = vmatmul.bf16.gmra.mxu0 %v537
    %v638 = vpop.f32.mrf.mxu0
    %v639 = vadd.f32 %v569, %v638
    %v640 = vpop.f32.mrf.mxu0
    %v641 = vadd.f32 %v569, %v640
    %642 = vmatmul.bf16.gmra.mxu0 %v538
    %v643 = vpop.f32.mrf.mxu0
    %v644 = vadd.f32 %v569, %v643
    %v645 = vpop.f32.mrf.mxu0
    %v646 = vadd.f32 %v569, %v645
    %647 = vmatmul.bf16.gmra.mxu0 %v539
    %v648 = vpop.f32.mrf.mxu0
    %v649 = vadd.f32 %v569, %v648
    %v650 = vpop.f32.mrf.mxu0
    %v651 = vadd.f32 %v569, %v650
    %652 = vmatmul.bf16.gmra.mxu0 %v540
    %v653 = vpop.f32.mrf.mxu0
    %v654 = vadd.f32 %v569, %v653
    %v655 = vpop.f32.mrf.mxu0
    %v656 = vadd.f32 %v569, %v655
    %657 = vmatmul.bf16.gmra.mxu0 %v541
    %v658 = vpop.f32.mrf.mxu0
    %v659 = vadd.f32 %v569, %v658
    %v660 = vpop.f32.mrf.mxu0
    %v661 = vadd.f32 %v569, %v660
    %662 = vmatmul.bf16.gmra.mxu0 %v542
    %v663 = vpop.f32.mrf.mxu0
    %v664 = vadd.f32 %v569, %v663
    %v665 = vpop.f32.mrf.mxu0
    %v666 = vadd.f32 %v569, %v665
    %667 = vmatmul.bf16.gmra.mxu0 %v543
    %v668 = vpop.f32.mrf.mxu0
    %v669 = vadd.f32 %v569, %v668
    %v670 = vpop.f32.mrf.mxu0
    %v671 = vadd.f32 %v569, %v670
    %672 = vmatmul.bf16.gmra.mxu0 %v544
    %v673 = vpop.f32.mrf.mxu0
    %v674 = vadd.f32 %v569, %v673
    %v675 = vpop.f32.mrf.mxu0
    %v676 = vadd.f32 %v569, %v675
    %677 = vmatmul.bf16.gmra.mxu0 %v545
    %v678 = vpop.f32.mrf.mxu0
    %v679 = vadd.f32 %v569, %v678
    %v680 = vpop.f32.mrf.mxu0
    %v681 = vadd.f32 %v569, %v680
    %682 = vmatmul.bf16.gmra.mxu0 %v546
    %v683 = vpop.f32.mrf.mxu0
    %v684 = vadd.f32 %v569, %v683
    %v685 = vpop.f32.mrf.mxu0
    %v686 = vadd.f32 %v569, %v685
    %687 = vmatmul.bf16.gmra.mxu0 %v547
    %v688 = vpop.f32.mrf.mxu0
    %v689 = vadd.f32 %v569, %v688
    %v690 = vpop.f32.mrf.mxu0
    %v691 = vadd.f32 %v569, %v690
    %692 = vmatmul.bf16.gmra.mxu0 %v548
    %v693 = vpop.f32.mrf.mxu0
    %v694 = vadd.f32 %v569, %v693
    %v695 = vpop.f32.mrf.mxu0
    %v696 = vadd.f32 %v569, %v695
    %697 = vmatmul.bf16.gmra.mxu0 %v549
    %v698 = vpop.f32.mrf.mxu0
    %v699 = vadd.f32 %v569, %v698
    %v700 = vpop.f32.mrf.mxu0
    %v701 = vadd.f32 %v569, %v700
    %702 = vmatmul.bf16.gmra.mxu0 %v550
    %v703 = vpop.f32.mrf.mxu0
    %v704 = vadd.f32 %v569, %v703
    %v705 = vpop.f32.mrf.mxu0
    %v706 = vadd.f32 %v569, %v705
    %707 = vdwg.mxu0
    %v708 = vsub.f32 0.0, %v629
    %v709 = vsub.f32 0.0, %v631
    %v710 = vsub.f32 0.0, %v634
    %v711 = vsub.f32 0.0, %v636
    %v712 = vsub.f32 0.0, %v639
    %v713 = vsub.f32 0.0, %v641
    %v714 = vsub.f32 0.0, %v644
    %v715 = vsub.f32 0.0, %v646
    %v716 = vsub.f32 0.0, %v649
    %v717 = vsub.f32 0.0, %v651
    %v718 = vsub.f32 0.0, %v654
    %v719 = vsub.f32 0.0, %v656
    %v720 = vsub.f32 0.0, %v659
    %v721 = vsub.f32 0.0, %v661
    %v722 = vsub.f32 0.0, %v664
    %v723 = vsub.f32 0.0, %v666
    %v724 = vsub.f32 0.0, %v669
    %v725 = vsub.f32 0.0, %v671
    %v726 = vsub.f32 0.0, %v674
    %v727 = vsub.f32 0.0, %v676
    %v728 = vsub.f32 0.0, %v679
    %v729 = vsub.f32 0.0, %v681
    %v730 = vsub.f32 0.0, %v684
    %v731 = vsub.f32 0.0, %v686
    %v732 = vsub.f32 0.0, %v689
    %v733 = vsub.f32 0.0, %v691
    %v734 = vsub.f32 0.0, %v694
    %v735 = vsub.f32 0.0, %v696
    %v736 = vsub.f32 0.0, %v699
    %v737 = vsub.f32 0.0, %v701
    %v738 = vsub.f32 0.0, %v704
    %v739 = vsub.f32 0.0, %v706
    %v740 = vmul.f32 %v708, 1.442695
    %v741 = vpow.pop %v740
    %v742 = vmul.f32 %v709, 1.442695
    %v743 = vpow.pop %v742
    %v744 = vmul.f32 %v710, 1.442695
    %v745 = vpow.pop %v744
    %v746 = vmul.f32 %v711, 1.442695
    %v747 = vpow.pop %v746
    %v748 = vmul.f32 %v712, 1.442695
    %v749 = vpow.pop %v748
    %v750 = vmul.f32 %v713, 1.442695
    %v751 = vpow.pop %v750
    %v752 = vmul.f32 %v714, 1.442695
    %v753 = vpow.pop %v752
    %v754 = vmul.f32 %v715, 1.442695
    %v755 = vpow.pop %v754
    %v756 = vmul.f32 %v716, 1.442695
    %v757 = vpow.pop %v756
    %v758 = vmul.f32 %v717, 1.442695
    %v759 = vpow.pop %v758
    %v760 = vmul.f32 %v718, 1.442695
    %v761 = vpow.pop %v760
    %v762 = vmul.f32 %v719, 1.442695
    %v763 = vpow.pop %v762
    %v764 = vmul.f32 %v720, 1.442695
    %v765 = vpow.pop %v764
    %v766 = vmul.f32 %v721, 1.442695
    %v767 = vpow.pop %v766
    %v768 = vmul.f32 %v722, 1.442695
    %v769 = vpow.pop %v768
    %v770 = vmul.f32 %v723, 1.442695
    %v771 = vpow.pop %v770
    %v772 = vmul.f32 %v724, 1.442695
    %v773 = vpow.pop %v772
    %v774 = vmul.f32 %v725, 1.442695
    %v775 = vpow.pop %v774
    %v776 = vmul.f32 %v726, 1.442695
    %v777 = vpow.pop %v776
    %v778 = vmul.f32 %v727, 1.442695
    %v779 = vpow.pop %v778
    %v780 = vmul.f32 %v728, 1.442695
    %v781 = vpow.pop %v780
    %v782 = vmul.f32 %v729, 1.442695
    %v783 = vpow.pop %v782
    %v784 = vmul.f32 %v730, 1.442695
    %v785 = vpow.pop %v784
    %v786 = vmul.f32 %v731, 1.442695
    %v787 = vpow.pop %v786
    %v788 = vmul.f32 %v732, 1.442695
    %v789 = vpow.pop %v788
    %v790 = vmul.f32 %v733, 1.442695
    %v791 = vpow.pop %v790
    %v792 = vmul.f32 %v734, 1.442695
    %v793 = vpow.pop %v792
    %v794 = vmul.f32 %v735, 1.442695
    %v795 = vpow.pop %v794
    %v796 = vmul.f32 %v736, 1.442695
    %v797 = vpow.pop %v796
    %v798 = vmul.f32 %v737, 1.442695
    %v799 = vpow.pop %v798
    %v800 = vmul.f32 %v738, 1.442695
    %v801 = vpow.pop %v800
    %v802 = vmul.f32 %v739, 1.442695
    %v803 = vpow.pop %v802
    %v804 = vadd.f32 %v741, 1.0
    %v805 = vadd.f32 %v743, 1.0
    %v806 = vadd.f32 %v745, 1.0
    %v807 = vadd.f32 %v747, 1.0
    %v808 = vadd.f32 %v749, 1.0
    %v809 = vadd.f32 %v751, 1.0
    %v810 = vadd.f32 %v753, 1.0
    %v811 = vadd.f32 %v755, 1.0
    %v812 = vadd.f32 %v757, 1.0
    %v813 = vadd.f32 %v759, 1.0
    %v814 = vadd.f32 %v761, 1.0
    %v815 = vadd.f32 %v763, 1.0
    %v816 = vadd.f32 %v765, 1.0
    %v817 = vadd.f32 %v767, 1.0
    %v818 = vadd.f32 %v769, 1.0
    %v819 = vadd.f32 %v771, 1.0
    %v820 = vadd.f32 %v773, 1.0
    %v821 = vadd.f32 %v775, 1.0
    %v822 = vadd.f32 %v777, 1.0
    %v823 = vadd.f32 %v779, 1.0
    %v824 = vadd.f32 %v781, 1.0
    %v825 = vadd.f32 %v783, 1.0
    %v826 = vadd.f32 %v785, 1.0
    %v827 = vadd.f32 %v787, 1.0
    %v828 = vadd.f32 %v789, 1.0
    %v829 = vadd.f32 %v791, 1.0
    %v830 = vadd.f32 %v793, 1.0
    %v831 = vadd.f32 %v795, 1.0
    %v832 = vadd.f32 %v797, 1.0
    %v833 = vadd.f32 %v799, 1.0
    %v834 = vadd.f32 %v801, 1.0
    %v835 = vadd.f32 %v803, 1.0
    %v836 = vrcp.pop %v804
    %v837 = vmul.f32 %v804, %v836
    %v838 = vsub.f32 1.0, %v837
    %v839 = vmul.f32 %v836, %v838
    %v840 = vadd.f32 %v836, %v839
    %vm841 = vweird.f32 %v804
    %vm842 = vweird.f32 %v836
    %vm843 = vmor %vm841, %vm842
    %v844 = vsel %vm843, %v836, %v840
    %v845 = vand.u32 2147483647, %v804
    %vm846 = vcmp.eq.f32.partialorder %v845, 8.507059e+37
    %v847 = vand.u32 %v804, 2147483648
    %v848 = vor.u32 1.1754944e-38, %v847
    %v849 = vsel %vm846, %v848, %v844
    %v850 = vmul.f32 1.0, %v849
    %v851 = vrcp.pop %v805
    %v852 = vmul.f32 %v805, %v851
    %v853 = vsub.f32 1.0, %v852
    %v854 = vmul.f32 %v851, %v853
    %v855 = vadd.f32 %v851, %v854
    %vm856 = vweird.f32 %v805
    %vm857 = vweird.f32 %v851
    %vm858 = vmor %vm856, %vm857
    %v859 = vsel %vm858, %v851, %v855
    %v860 = vand.u32 2147483647, %v805
    %vm861 = vcmp.eq.f32.partialorder %v860, 8.507059e+37
    %v862 = vand.u32 %v805, 2147483648
    %v863 = vor.u32 1.1754944e-38, %v862
    %v864 = vsel %vm861, %v863, %v859
    %v865 = vmul.f32 1.0, %v864
    %v866 = vrcp.pop %v806
    %v867 = vmul.f32 %v806, %v866
    %v868 = vsub.f32 1.0, %v867
    %v869 = vmul.f32 %v866, %v868
    %v870 = vadd.f32 %v866, %v869
    %vm871 = vweird.f32 %v806
    %vm872 = vweird.f32 %v866
    %vm873 = vmor %vm871, %vm872
    %v874 = vsel %vm873, %v866, %v870
    %v875 = vand.u32 2147483647, %v806
    %vm876 = vcmp.eq.f32.partialorder %v875, 8.507059e+37
    %v877 = vand.u32 %v806, 2147483648
    %v878 = vor.u32 1.1754944e-38, %v877
    %v879 = vsel %vm876, %v878, %v874
    %v880 = vmul.f32 1.0, %v879
    %v881 = vrcp.pop %v807
    %v882 = vmul.f32 %v807, %v881
    %v883 = vsub.f32 1.0, %v882
    %v884 = vmul.f32 %v881, %v883
    %v885 = vadd.f32 %v881, %v884
    %vm886 = vweird.f32 %v807
    %vm887 = vweird.f32 %v881
    %vm888 = vmor %vm886, %vm887
    %v889 = vsel %vm888, %v881, %v885
    %v890 = vand.u32 2147483647, %v807
    %vm891 = vcmp.eq.f32.partialorder %v890, 8.507059e+37
    %v892 = vand.u32 %v807, 2147483648
    %v893 = vor.u32 1.1754944e-38, %v892
    %v894 = vsel %vm891, %v893, %v889
    %v895 = vmul.f32 1.0, %v894
    %v896 = vrcp.pop %v808
    %v897 = vmul.f32 %v808, %v896
    %v898 = vsub.f32 1.0, %v897
    %v899 = vmul.f32 %v896, %v898
    %v900 = vadd.f32 %v896, %v899
    %vm901 = vweird.f32 %v808
    %vm902 = vweird.f32 %v896
    %vm903 = vmor %vm901, %vm902
    %v904 = vsel %vm903, %v896, %v900
    %v905 = vand.u32 2147483647, %v808
    %vm906 = vcmp.eq.f32.partialorder %v905, 8.507059e+37
    %v907 = vand.u32 %v808, 2147483648
    %v908 = vor.u32 1.1754944e-38, %v907
    %v909 = vsel %vm906, %v908, %v904
    %v910 = vmul.f32 1.0, %v909
    %v911 = vrcp.pop %v809
    %v912 = vmul.f32 %v809, %v911
    %v913 = vsub.f32 1.0, %v912
    %v914 = vmul.f32 %v911, %v913
    %v915 = vadd.f32 %v911, %v914
    %vm916 = vweird.f32 %v809
    %vm917 = vweird.f32 %v911
    %vm918 = vmor %vm916, %vm917
    %v919 = vsel %vm918, %v911, %v915
    %v920 = vand.u32 2147483647, %v809
    %vm921 = vcmp.eq.f32.partialorder %v920, 8.507059e+37
    %v922 = vand.u32 %v809, 2147483648
    %v923 = vor.u32 1.1754944e-38, %v922
    %v924 = vsel %vm921, %v923, %v919
    %v925 = vmul.f32 1.0, %v924
    %v926 = vrcp.pop %v810
    %v927 = vmul.f32 %v810, %v926
    %v928 = vsub.f32 1.0, %v927
    %v929 = vmul.f32 %v926, %v928
    %v930 = vadd.f32 %v926, %v929
    %vm931 = vweird.f32 %v810
    %vm932 = vweird.f32 %v926
    %vm933 = vmor %vm931, %vm932
    %v934 = vsel %vm933, %v926, %v930
    %v935 = vand.u32 2147483647, %v810
    %vm936 = vcmp.eq.f32.partialorder %v935, 8.507059e+37
    %v937 = vand.u32 %v810, 2147483648
    %v938 = vor.u32 1.1754944e-38, %v937
    %v939 = vsel %vm936, %v938, %v934
    %v940 = vmul.f32 1.0, %v939
    %v941 = vrcp.pop %v811
    %v942 = vmul.f32 %v811, %v941
    %v943 = vsub.f32 1.0, %v942
    %v944 = vmul.f32 %v941, %v943
    %v945 = vadd.f32 %v941, %v944
    %vm946 = vweird.f32 %v811
    %vm947 = vweird.f32 %v941
    %vm948 = vmor %vm946, %vm947
    %v949 = vsel %vm948, %v941, %v945
    %v950 = vand.u32 2147483647, %v811
    %vm951 = vcmp.eq.f32.partialorder %v950, 8.507059e+37
    %v952 = vand.u32 %v811, 2147483648
    %v953 = vor.u32 1.1754944e-38, %v952
    %v954 = vsel %vm951, %v953, %v949
    %v955 = vmul.f32 1.0, %v954
    %v956 = vrcp.pop %v812
    %v957 = vmul.f32 %v812, %v956
    %v958 = vsub.f32 1.0, %v957
    %v959 = vmul.f32 %v956, %v958
    %v960 = vadd.f32 %v956, %v959
    %vm961 = vweird.f32 %v812
    %vm962 = vweird.f32 %v956
    %vm963 = vmor %vm961, %vm962
    %v964 = vsel %vm963, %v956, %v960
    %v965 = vand.u32 2147483647, %v812
    %vm966 = vcmp.eq.f32.partialorder %v965, 8.507059e+37
    %v967 = vand.u32 %v812, 2147483648
    %v968 = vor.u32 1.1754944e-38, %v967
    %v969 = vsel %vm966, %v968, %v964
    %v970 = vmul.f32 1.0, %v969
    %v971 = vrcp.pop %v813
    %v972 = vmul.f32 %v813, %v971
    %v973 = vsub.f32 1.0, %v972
    %v974 = vmul.f32 %v971, %v973
    %v975 = vadd.f32 %v971, %v974
    %vm976 = vweird.f32 %v813
    %vm977 = vweird.f32 %v971
    %vm978 = vmor %vm976, %vm977
    %v979 = vsel %vm978, %v971, %v975
    %v980 = vand.u32 2147483647, %v813
    %vm981 = vcmp.eq.f32.partialorder %v980, 8.507059e+37
    %v982 = vand.u32 %v813, 2147483648
    %v983 = vor.u32 1.1754944e-38, %v982
    %v984 = vsel %vm981, %v983, %v979
    %v985 = vmul.f32 1.0, %v984
    %v986 = vrcp.pop %v814
    %v987 = vmul.f32 %v814, %v986
    %v988 = vsub.f32 1.0, %v987
    %v989 = vmul.f32 %v986, %v988
    %v990 = vadd.f32 %v986, %v989
    %vm991 = vweird.f32 %v814
    %vm992 = vweird.f32 %v986
    %vm993 = vmor %vm991, %vm992
    %v994 = vsel %vm993, %v986, %v990
    %v995 = vand.u32 2147483647, %v814
    %vm996 = vcmp.eq.f32.partialorder %v995, 8.507059e+37
    %v997 = vand.u32 %v814, 2147483648
    %v998 = vor.u32 1.1754944e-38, %v997
    %v999 = vsel %vm996, %v998, %v994
    %v1000 = vmul.f32 1.0, %v999
    %v1001 = vrcp.pop %v815
    %v1002 = vmul.f32 %v815, %v1001
    %v1003 = vsub.f32 1.0, %v1002
    %v1004 = vmul.f32 %v1001, %v1003
    %v1005 = vadd.f32 %v1001, %v1004
    %vm1006 = vweird.f32 %v815
    %vm1007 = vweird.f32 %v1001
    %vm1008 = vmor %vm1006, %vm1007
    %v1009 = vsel %vm1008, %v1001, %v1005
    %v1010 = vand.u32 2147483647, %v815
    %vm1011 = vcmp.eq.f32.partialorder %v1010, 8.507059e+37
    %v1012 = vand.u32 %v815, 2147483648
    %v1013 = vor.u32 1.1754944e-38, %v1012
    %v1014 = vsel %vm1011, %v1013, %v1009
    %v1015 = vmul.f32 1.0, %v1014
    %v1016 = vrcp.pop %v816
    %v1017 = vmul.f32 %v816, %v1016
    %v1018 = vsub.f32 1.0, %v1017
    %v1019 = vmul.f32 %v1016, %v1018
    %v1020 = vadd.f32 %v1016, %v1019
    %vm1021 = vweird.f32 %v816
    %vm1022 = vweird.f32 %v1016
    %vm1023 = vmor %vm1021, %vm1022
    %v1024 = vsel %vm1023, %v1016, %v1020
    %v1025 = vand.u32 2147483647, %v816
    %vm1026 = vcmp.eq.f32.partialorder %v1025, 8.507059e+37
    %v1027 = vand.u32 %v816, 2147483648
    %v1028 = vor.u32 1.1754944e-38, %v1027
    %v1029 = vsel %vm1026, %v1028, %v1024
    %v1030 = vmul.f32 1.0, %v1029
    %v1031 = vrcp.pop %v817
    %v1032 = vmul.f32 %v817, %v1031
    %v1033 = vsub.f32 1.0, %v1032
    %v1034 = vmul.f32 %v1031, %v1033
    %v1035 = vadd.f32 %v1031, %v1034
    %vm1036 = vweird.f32 %v817
    %vm1037 = vweird.f32 %v1031
    %vm1038 = vmor %vm1036, %vm1037
    %v1039 = vsel %vm1038, %v1031, %v1035
    %v1040 = vand.u32 2147483647, %v817
    %vm1041 = vcmp.eq.f32.partialorder %v1040, 8.507059e+37
    %v1042 = vand.u32 %v817, 2147483648
    %v1043 = vor.u32 1.1754944e-38, %v1042
    %v1044 = vsel %vm1041, %v1043, %v1039
    %v1045 = vmul.f32 1.0, %v1044
    %v1046 = vrcp.pop %v818
    %v1047 = vmul.f32 %v818, %v1046
    %v1048 = vsub.f32 1.0, %v1047
    %v1049 = vmul.f32 %v1046, %v1048
    %v1050 = vadd.f32 %v1046, %v1049
    %vm1051 = vweird.f32 %v818
    %vm1052 = vweird.f32 %v1046
    %vm1053 = vmor %vm1051, %vm1052
    %v1054 = vsel %vm1053, %v1046, %v1050
    %v1055 = vand.u32 2147483647, %v818
    %vm1056 = vcmp.eq.f32.partialorder %v1055, 8.507059e+37
    %v1057 = vand.u32 %v818, 2147483648
    %v1058 = vor.u32 1.1754944e-38, %v1057
    %v1059 = vsel %vm1056, %v1058, %v1054
    %v1060 = vmul.f32 1.0, %v1059
    %v1061 = vrcp.pop %v819
    %v1062 = vmul.f32 %v819, %v1061
    %v1063 = vsub.f32 1.0, %v1062
    %v1064 = vmul.f32 %v1061, %v1063
    %v1065 = vadd.f32 %v1061, %v1064
    %vm1066 = vweird.f32 %v819
    %vm1067 = vweird.f32 %v1061
    %vm1068 = vmor %vm1066, %vm1067
    %v1069 = vsel %vm1068, %v1061, %v1065
    %v1070 = vand.u32 2147483647, %v819
    %vm1071 = vcmp.eq.f32.partialorder %v1070, 8.507059e+37
    %v1072 = vand.u32 %v819, 2147483648
    %v1073 = vor.u32 1.1754944e-38, %v1072
    %v1074 = vsel %vm1071, %v1073, %v1069
    %v1075 = vmul.f32 1.0, %v1074
    %v1076 = vrcp.pop %v820
    %v1077 = vmul.f32 %v820, %v1076
    %v1078 = vsub.f32 1.0, %v1077
    %v1079 = vmul.f32 %v1076, %v1078
    %v1080 = vadd.f32 %v1076, %v1079
    %vm1081 = vweird.f32 %v820
    %vm1082 = vweird.f32 %v1076
    %vm1083 = vmor %vm1081, %vm1082
    %v1084 = vsel %vm1083, %v1076, %v1080
    %v1085 = vand.u32 2147483647, %v820
    %vm1086 = vcmp.eq.f32.partialorder %v1085, 8.507059e+37
    %v1087 = vand.u32 %v820, 2147483648
    %v1088 = vor.u32 1.1754944e-38, %v1087
    %v1089 = vsel %vm1086, %v1088, %v1084
    %v1090 = vmul.f32 1.0, %v1089
    %v1091 = vrcp.pop %v821
    %v1092 = vmul.f32 %v821, %v1091
    %v1093 = vsub.f32 1.0, %v1092
    %v1094 = vmul.f32 %v1091, %v1093
    %v1095 = vadd.f32 %v1091, %v1094
    %vm1096 = vweird.f32 %v821
    %vm1097 = vweird.f32 %v1091
    %vm1098 = vmor %vm1096, %vm1097
    %v1099 = vsel %vm1098, %v1091, %v1095
    %v1100 = vand.u32 2147483647, %v821
    %vm1101 = vcmp.eq.f32.partialorder %v1100, 8.507059e+37
    %v1102 = vand.u32 %v821, 2147483648
    %v1103 = vor.u32 1.1754944e-38, %v1102
    %v1104 = vsel %vm1101, %v1103, %v1099
    %v1105 = vmul.f32 1.0, %v1104
    %v1106 = vrcp.pop %v822
    %v1107 = vmul.f32 %v822, %v1106
    %v1108 = vsub.f32 1.0, %v1107
    %v1109 = vmul.f32 %v1106, %v1108
    %v1110 = vadd.f32 %v1106, %v1109
    %vm1111 = vweird.f32 %v822
    %vm1112 = vweird.f32 %v1106
    %vm1113 = vmor %vm1111, %vm1112
    %v1114 = vsel %vm1113, %v1106, %v1110
    %v1115 = vand.u32 2147483647, %v822
    %vm1116 = vcmp.eq.f32.partialorder %v1115, 8.507059e+37
    %v1117 = vand.u32 %v822, 2147483648
    %v1118 = vor.u32 1.1754944e-38, %v1117
    %v1119 = vsel %vm1116, %v1118, %v1114
    %v1120 = vmul.f32 1.0, %v1119
    %v1121 = vrcp.pop %v823
    %v1122 = vmul.f32 %v823, %v1121
    %v1123 = vsub.f32 1.0, %v1122
    %v1124 = vmul.f32 %v1121, %v1123
    %v1125 = vadd.f32 %v1121, %v1124
    %vm1126 = vweird.f32 %v823
    %vm1127 = vweird.f32 %v1121
    %vm1128 = vmor %vm1126, %vm1127
    %v1129 = vsel %vm1128, %v1121, %v1125
    %v1130 = vand.u32 2147483647, %v823
    %vm1131 = vcmp.eq.f32.partialorder %v1130, 8.507059e+37
    %v1132 = vand.u32 %v823, 2147483648
    %v1133 = vor.u32 1.1754944e-38, %v1132
    %v1134 = vsel %vm1131, %v1133, %v1129
    %v1135 = vmul.f32 1.0, %v1134
    %v1136 = vrcp.pop %v824
    %v1137 = vmul.f32 %v824, %v1136
    %v1138 = vsub.f32 1.0, %v1137
    %v1139 = vmul.f32 %v1136, %v1138
    %v1140 = vadd.f32 %v1136, %v1139
    %vm1141 = vweird.f32 %v824
    %vm1142 = vweird.f32 %v1136
    %vm1143 = vmor %vm1141, %vm1142
    %v1144 = vsel %vm1143, %v1136, %v1140
    %v1145 = vand.u32 2147483647, %v824
    %vm1146 = vcmp.eq.f32.partialorder %v1145, 8.507059e+37
    %v1147 = vand.u32 %v824, 2147483648
    %v1148 = vor.u32 1.1754944e-38, %v1147
    %v1149 = vsel %vm1146, %v1148, %v1144
    %v1150 = vmul.f32 1.0, %v1149
    %v1151 = vrcp.pop %v825
    %v1152 = vmul.f32 %v825, %v1151
    %v1153 = vsub.f32 1.0, %v1152
    %v1154 = vmul.f32 %v1151, %v1153
    %v1155 = vadd.f32 %v1151, %v1154
    %vm1156 = vweird.f32 %v825
    %vm1157 = vweird.f32 %v1151
    %vm1158 = vmor %vm1156, %vm1157
    %v1159 = vsel %vm1158, %v1151, %v1155
    %v1160 = vand.u32 2147483647, %v825
    %vm1161 = vcmp.eq.f32.partialorder %v1160, 8.507059e+37
    %v1162 = vand.u32 %v825, 2147483648
    %v1163 = vor.u32 1.1754944e-38, %v1162
    %v1164 = vsel %vm1161, %v1163, %v1159
    %v1165 = vmul.f32 1.0, %v1164
    %v1166 = vrcp.pop %v826
    %v1167 = vmul.f32 %v826, %v1166
    %v1168 = vsub.f32 1.0, %v1167
    %v1169 = vmul.f32 %v1166, %v1168
    %v1170 = vadd.f32 %v1166, %v1169
    %vm1171 = vweird.f32 %v826
    %vm1172 = vweird.f32 %v1166
    %vm1173 = vmor %vm1171, %vm1172
    %v1174 = vsel %vm1173, %v1166, %v1170
    %v1175 = vand.u32 2147483647, %v826
    %vm1176 = vcmp.eq.f32.partialorder %v1175, 8.507059e+37
    %v1177 = vand.u32 %v826, 2147483648
    %v1178 = vor.u32 1.1754944e-38, %v1177
    %v1179 = vsel %vm1176, %v1178, %v1174
    %v1180 = vmul.f32 1.0, %v1179
    %v1181 = vrcp.pop %v827
    %v1182 = vmul.f32 %v827, %v1181
    %v1183 = vsub.f32 1.0, %v1182
    %v1184 = vmul.f32 %v1181, %v1183
    %v1185 = vadd.f32 %v1181, %v1184
    %vm1186 = vweird.f32 %v827
    %vm1187 = vweird.f32 %v1181
    %vm1188 = vmor %vm1186, %vm1187
    %v1189 = vsel %vm1188, %v1181, %v1185
    %v1190 = vand.u32 2147483647, %v827
    %vm1191 = vcmp.eq.f32.partialorder %v1190, 8.507059e+37
    %v1192 = vand.u32 %v827, 2147483648
    %v1193 = vor.u32 1.1754944e-38, %v1192
    %v1194 = vsel %vm1191, %v1193, %v1189
    %v1195 = vmul.f32 1.0, %v1194
    %v1196 = vrcp.pop %v828
    %v1197 = vmul.f32 %v828, %v1196
    %v1198 = vsub.f32 1.0, %v1197
    %v1199 = vmul.f32 %v1196, %v1198
    %v1200 = vadd.f32 %v1196, %v1199
    %vm1201 = vweird.f32 %v828
    %vm1202 = vweird.f32 %v1196
    %vm1203 = vmor %vm1201, %vm1202
    %v1204 = vsel %vm1203, %v1196, %v1200
    %v1205 = vand.u32 2147483647, %v828
    %vm1206 = vcmp.eq.f32.partialorder %v1205, 8.507059e+37
    %v1207 = vand.u32 %v828, 2147483648
    %v1208 = vor.u32 1.1754944e-38, %v1207
    %v1209 = vsel %vm1206, %v1208, %v1204
    %v1210 = vmul.f32 1.0, %v1209
    %v1211 = vrcp.pop %v829
    %v1212 = vmul.f32 %v829, %v1211
    %v1213 = vsub.f32 1.0, %v1212
    %v1214 = vmul.f32 %v1211, %v1213
    %v1215 = vadd.f32 %v1211, %v1214
    %vm1216 = vweird.f32 %v829
    %vm1217 = vweird.f32 %v1211
    %vm1218 = vmor %vm1216, %vm1217
    %v1219 = vsel %vm1218, %v1211, %v1215
    %v1220 = vand.u32 2147483647, %v829
    %vm1221 = vcmp.eq.f32.partialorder %v1220, 8.507059e+37
    %v1222 = vand.u32 %v829, 2147483648
    %v1223 = vor.u32 1.1754944e-38, %v1222
    %v1224 = vsel %vm1221, %v1223, %v1219
    %v1225 = vmul.f32 1.0, %v1224
    %v1226 = vrcp.pop %v830
    %v1227 = vmul.f32 %v830, %v1226
    %v1228 = vsub.f32 1.0, %v1227
    %v1229 = vmul.f32 %v1226, %v1228
    %v1230 = vadd.f32 %v1226, %v1229
    %vm1231 = vweird.f32 %v830
    %vm1232 = vweird.f32 %v1226
    %vm1233 = vmor %vm1231, %vm1232
    %v1234 = vsel %vm1233, %v1226, %v1230
    %v1235 = vand.u32 2147483647, %v830
    %vm1236 = vcmp.eq.f32.partialorder %v1235, 8.507059e+37
    %v1237 = vand.u32 %v830, 2147483648
    %v1238 = vor.u32 1.1754944e-38, %v1237
    %v1239 = vsel %vm1236, %v1238, %v1234
    %v1240 = vmul.f32 1.0, %v1239
    %v1241 = vrcp.pop %v831
    %v1242 = vmul.f32 %v831, %v1241
    %v1243 = vsub.f32 1.0, %v1242
    %v1244 = vmul.f32 %v1241, %v1243
    %v1245 = vadd.f32 %v1241, %v1244
    %vm1246 = vweird.f32 %v831
    %vm1247 = vweird.f32 %v1241
    %vm1248 = vmor %vm1246, %vm1247
    %v1249 = vsel %vm1248, %v1241, %v1245
    %v1250 = vand.u32 2147483647, %v831
    %vm1251 = vcmp.eq.f32.partialorder %v1250, 8.507059e+37
    %v1252 = vand.u32 %v831, 2147483648
    %v1253 = vor.u32 1.1754944e-38, %v1252
    %v1254 = vsel %vm1251, %v1253, %v1249
    %v1255 = vmul.f32 1.0, %v1254
    %v1256 = vrcp.pop %v832
    %v1257 = vmul.f32 %v832, %v1256
    %v1258 = vsub.f32 1.0, %v1257
    %v1259 = vmul.f32 %v1256, %v1258
    %v1260 = vadd.f32 %v1256, %v1259
    %vm1261 = vweird.f32 %v832
    %vm1262 = vweird.f32 %v1256
    %vm1263 = vmor %vm1261, %vm1262
    %v1264 = vsel %vm1263, %v1256, %v1260
    %v1265 = vand.u32 2147483647, %v832
    %vm1266 = vcmp.eq.f32.partialorder %v1265, 8.507059e+37
    %v1267 = vand.u32 %v832, 2147483648
    %v1268 = vor.u32 1.1754944e-38, %v1267
    %v1269 = vsel %vm1266, %v1268, %v1264
    %v1270 = vmul.f32 1.0, %v1269
    %v1271 = vrcp.pop %v833
    %v1272 = vmul.f32 %v833, %v1271
    %v1273 = vsub.f32 1.0, %v1272
    %v1274 = vmul.f32 %v1271, %v1273
    %v1275 = vadd.f32 %v1271, %v1274
    %vm1276 = vweird.f32 %v833
    %vm1277 = vweird.f32 %v1271
    %vm1278 = vmor %vm1276, %vm1277
    %v1279 = vsel %vm1278, %v1271, %v1275
    %v1280 = vand.u32 2147483647, %v833
    %vm1281 = vcmp.eq.f32.partialorder %v1280, 8.507059e+37
    %v1282 = vand.u32 %v833, 2147483648
    %v1283 = vor.u32 1.1754944e-38, %v1282
    %v1284 = vsel %vm1281, %v1283, %v1279
    %v1285 = vmul.f32 1.0, %v1284
    %v1286 = vrcp.pop %v834
    %v1287 = vmul.f32 %v834, %v1286
    %v1288 = vsub.f32 1.0, %v1287
    %v1289 = vmul.f32 %v1286, %v1288
    %v1290 = vadd.f32 %v1286, %v1289
    %vm1291 = vweird.f32 %v834
    %vm1292 = vweird.f32 %v1286
    %vm1293 = vmor %vm1291, %vm1292
    %v1294 = vsel %vm1293, %v1286, %v1290
    %v1295 = vand.u32 2147483647, %v834
    %vm1296 = vcmp.eq.f32.partialorder %v1295, 8.507059e+37
    %v1297 = vand.u32 %v834, 2147483648
    %v1298 = vor.u32 1.1754944e-38, %v1297
    %v1299 = vsel %vm1296, %v1298, %v1294
    %v1300 = vmul.f32 1.0, %v1299
    %v1301 = vrcp.pop %v835
    %v1302 = vmul.f32 %v835, %v1301
    %v1303 = vsub.f32 1.0, %v1302
    %v1304 = vmul.f32 %v1301, %v1303
    %v1305 = vadd.f32 %v1301, %v1304
    %vm1306 = vweird.f32 %v835
    %vm1307 = vweird.f32 %v1301
    %vm1308 = vmor %vm1306, %vm1307
    %v1309 = vsel %vm1308, %v1301, %v1305
    %v1310 = vand.u32 2147483647, %v835
    %vm1311 = vcmp.eq.f32.partialorder %v1310, 8.507059e+37
    %v1312 = vand.u32 %v835, 2147483648
    %v1313 = vor.u32 1.1754944e-38, %v1312
    %v1314 = vsel %vm1311, %v1313, %v1309
    %v1315 = vmul.f32 1.0, %v1314
    %v1316 = vpack.c.bf16 %v850, %v850
    %v1317 = vpack.c.bf16 %v865, %v865
    %v1318 = vpack.c.bf16 %v880, %v880
    %v1319 = vpack.c.bf16 %v895, %v895
    %v1320 = vpack.c.bf16 %v910, %v910
    %v1321 = vpack.c.bf16 %v925, %v925
    %v1322 = vpack.c.bf16 %v940, %v940
    %v1323 = vpack.c.bf16 %v955, %v955
    %v1324 = vpack.c.bf16 %v970, %v970
    %v1325 = vpack.c.bf16 %v985, %v985
    %v1326 = vpack.c.bf16 %v1000, %v1000
    %v1327 = vpack.c.bf16 %v1015, %v1015
    %v1328 = vpack.c.bf16 %v1030, %v1030
    %v1329 = vpack.c.bf16 %v1045, %v1045
    %v1330 = vpack.c.bf16 %v1060, %v1060
    %v1331 = vpack.c.bf16 %v1075, %v1075
    %v1332 = vpack.c.bf16 %v1090, %v1090
    %v1333 = vpack.c.bf16 %v1105, %v1105
    %v1334 = vpack.c.bf16 %v1120, %v1120
    %v1335 = vpack.c.bf16 %v1135, %v1135
    %v1336 = vpack.c.bf16 %v1150, %v1150
    %v1337 = vpack.c.bf16 %v1165, %v1165
    %v1338 = vpack.c.bf16 %v1180, %v1180
    %v1339 = vpack.c.bf16 %v1195, %v1195
    %v1340 = vpack.c.bf16 %v1210, %v1210
    %v1341 = vpack.c.bf16 %v1225, %v1225
    %v1342 = vpack.c.bf16 %v1240, %v1240
    %v1343 = vpack.c.bf16 %v1255, %v1255
    %v1344 = vpack.c.bf16 %v1270, %v1270
    %v1345 = vpack.c.bf16 %v1285, %v1285
    %v1346 = vpack.c.bf16 %v1300, %v1300
    %v1347 = vpack.c.bf16 %v1315, %v1315
    %1348 = vst [vmem:[#allocation2] sm:$0xf] %v1316
    %1349 = vst [vmem:[#allocation2 + $0x4] sm:$0xf] %v1317
    %1350 = vst [vmem:[#allocation2 + $0x8] sm:$0xf] %v1318
    %1351 = vst [vmem:[#allocation2 + $0xc] sm:$0xf] %v1319
    %1352 = vst [vmem:[#allocation2 + $0x10] sm:$0xf] %v1320
    %1353 = vst [vmem:[#allocation2 + $0x14] sm:$0xf] %v1321
    %1354 = vst [vmem:[#allocation2 + $0x18] sm:$0xf] %v1322
    %1355 = vst [vmem:[#allocation2 + $0x1c] sm:$0xf] %v1323
    %1356 = vst [vmem:[#allocation2 + $0x20] sm:$0xf] %v1324
    %1357 = vst [vmem:[#allocation2 + $0x24] sm:$0xf] %v1325
    %1358 = vst [vmem:[#allocation2 + $0x28] sm:$0xf] %v1326
    %1359 = vst [vmem:[#allocation2 + $0x2c] sm:$0xf] %v1327
    %1360 = vst [vmem:[#allocation2 + $0x30] sm:$0xf] %v1328
    %1361 = vst [vmem:[#allocation2 + $0x34] sm:$0xf] %v1329
    %1362 = vst [vmem:[#allocation2 + $0x38] sm:$0xf] %v1330
    %1363 = vst [vmem:[#allocation2 + $0x3c] sm:$0xf] %v1331
    %1364 = vst [vmem:[#allocation2 + $0x40] sm:$0xf] %v1332
    %1365 = vst [vmem:[#allocation2 + $0x44] sm:$0xf] %v1333
    %1366 = vst [vmem:[#allocation2 + $0x48] sm:$0xf] %v1334
    %1367 = vst [vmem:[#allocation2 + $0x4c] sm:$0xf] %v1335
    %1368 = vst [vmem:[#allocation2 + $0x50] sm:$0xf] %v1336
    %1369 = vst [vmem:[#allocation2 + $0x54] sm:$0xf] %v1337
    %1370 = vst [vmem:[#allocation2 + $0x58] sm:$0xf] %v1338
    %1371 = vst [vmem:[#allocation2 + $0x5c] sm:$0xf] %v1339
    %1372 = vst [vmem:[#allocation2 + $0x60] sm:$0xf] %v1340
    %1373 = vst [vmem:[#allocation2 + $0x64] sm:$0xf] %v1341
    %1374 = vst [vmem:[#allocation2 + $0x68] sm:$0xf] %v1342
    %1375 = vst [vmem:[#allocation2 + $0x6c] sm:$0xf] %v1343
    %1376 = vst [vmem:[#allocation2 + $0x70] sm:$0xf] %v1344
    %1377 = vst [vmem:[#allocation2 + $0x74] sm:$0xf] %v1345
    %1378 = vst [vmem:[#allocation2 + $0x78] sm:$0xf] %v1346
    %1379 = vst [vmem:[#allocation2 + $0x7c] sm:$0xf] %v1347
    // Predicated region
    $region30: #{tpu_custom_call.1} parent=1 // pred_check
      _
    $region31: #{tpu_custom_call.1} parent=1 // pred_check_branch
      %1381 = sbr.rel (0) target = $region33
    $region32: #{tpu_custom_call.1} parent=1 // pred_region
      %1383 = vsyncadd [#allocation3], 0
      %s1384 = sshll.u32 [#allocation2], 4
      %s1385 = int_to_ptr.vmem [resolvable:$true] %s1384
      %s1386 = sshll.u32 %s7, 4
      %s1387 = int_to_ptr.hbm [resolvable:$true] %s1386
      %1392 = dma.vmem_to_hbm [thread:$0]  %s1385, 2048, %s1387, [#allocation3], 64, 64, 4
    $region33: #{tpu_custom_call.1} parent=1 // pred_fallthru
      _
    // Predicated region
    $region34: #{tpu_custom_call.1} parent=1 // pred_check
      _
    $region35: #{tpu_custom_call.1} parent=1 // pred_check_branch
      %1394 = sbr.rel (0) target = $region37
    $region36: #{tpu_custom_call.1} parent=1 // pred_region
      %1396 = dma.done [#allocation3], 2048
    $region37: #{tpu_custom_call.1} parent=1 // pred_fallthru
      _
    %1397 = vsyncpa [#allocation3], 1

</llo_original>
